<compile_context>
chip_gen: v7x
topology: tpu7x:2x2x1
jax: 0.10.0
libtpu: 0.0.40
codegen_flags: <defaults>
</compile_context>

<pallas_src>
import functools
import math

import jax
import jax.numpy as jnp
from jax.experimental import pallas as pl
from jax.experimental.pallas import tpu as pltpu


# ----------------------------------------------------------------------------
# Fused Pallas kernel: one grid step per batch element.
# ----------------------------------------------------------------------------
def _fused_forward_kernel(pt_ref, wc_ref, bc_ref, w1_ref, b1_ref, w2_ref,
                          b2_ref, o_ref, conv_scr, *, c_out, spatial):
    # pt_ref:   (CKK, OH*OW)      im2col patches of this batch element
    #                             (columns channel-major, raw pixel values).
    # wc_ref:   (c_out, CKK)      conv weight, already scaled by 1/255.
    # bc_ref:   (c_out, 1)        conv bias (broadcasts along the lane/spatial dim).
    # w1_ref:   (c_out*spatial,H) fc1 weight, rows in PyTorch flatten order
    #                             (c, oy, ox) -> row c*spatial + p.
    # b1_ref:   (1, H)   w2_ref: (H, H)   b2_ref: (1, H)
    # o_ref:    (1, H)            output row for this batch element.
    # conv_scr: (c_out, spatial)  VMEM scratch holding the ReLU'd conv activation.

    # --- conv as a single MXU matmul, channel-major output -------------------
    ct = jnp.dot(wc_ref[...], pt_ref[...], preferred_element_type=jnp.float32)
    conv_scr[...] = jnp.maximum(ct + bc_ref[...], 0.0)      # bias + ReLU, in VMEM

    # --- Flatten + fc1 without any in-kernel relayout -------------------------
    # PyTorch's Flatten of the (c_out, OH, OW) activation is channel-major, so
    #   fc1(flat) = sum_c  conv[c, :] @ w1[c*spatial : (c+1)*spatial, :]
    # i.e. a K-blocked matmul whose K-blocks are the rows of conv_scr.  No
    # transpose / reshape of the activation is ever materialized.
    h = b1_ref[...]                                          # (1, hidden)
    for c in range(c_out):                                   # static unroll (c_out = hidden//2)
        h = h + jnp.dot(conv_scr[c:c + 1, :],
                        w1_ref[c * spatial:(c + 1) * spatial, :],
                        preferred_element_type=jnp.float32)
    h = jnp.maximum(h, 0.0)                                  # fc1 ReLU

    # --- fc2 + ReLU ------------------------------------------------------------
    o = jnp.dot(h, w2_ref[...], preferred_element_type=jnp.float32) + b2_ref[...]
    o_ref[...] = jnp.maximum(o, 0.0)


# ----------------------------------------------------------------------------
# Glue
# ----------------------------------------------------------------------------
def im2col_nchw(x, k):
    """x: (B, C, H, W) -> patches (B, C*k*k, OH*OW).

    Axis 1 is ordered (c, ki, kj) — PyTorch OIHW weight-flatten order;
    axis 2 is (oy, ox) row-major.  Pure-JAX glue (row-major merges are free).
    """
    B, C, H, W = x.shape
    OH, OW = H - k + 1, W - k + 1
    cols = jnp.stack(
        [x[:, :, i:i + OH, j:j + OW] for i in range(k) for j in range(k)],
        axis=2,
    )                                             # (B, C, k*k, OH, OW)
    return cols.reshape(B, C * k * k, OH * OW)


def prepare_params(params):
    """One-time parameter prep (hoisted out of the per-call path).

    * folds the x/255 input scaling into the conv weight,
    * flattens the conv weight to (c_out, C*k*k),
    * reshapes the biases into the 2-D layouts the kernel expects.
    """
    w_conv, b_conv, w1, b1, w2, b2 = params
    c_out = w_conv.shape[0]
    wc = w_conv.reshape(c_out, -1).astype(jnp.float32) * (1.0 / 255.0)
    bc = b_conv.reshape(c_out, 1)
    return (wc, bc, w1, b1.reshape(1, -1), w2, b2.reshape(1, -1))


def cnn_base_forward(x_nchw, prepared, kernel_size=3):
    """Pallas implementation of CNNBase.forward (use_ReLU=True)."""
    wc, bc, w1, b1, w2, b2 = prepared
    B, C, H, W = x_nchw.shape
    k = kernel_size
    OH, OW = H - k + 1, W - k + 1
    spatial = OH * OW
    c_out, ckk = wc.shape
    hidden = w2.shape[0]
    assert ckk == C * k * k
    assert w1.shape == (c_out * spatial, hidden), "fc1 weight / conv shape mismatch"

    patches = im2col_nchw(x_nchw, k)              # (B, CKK, OH*OW)

    kernel = functools.partial(_fused_forward_kernel, c_out=c_out, spatial=spatial)
    full = lambda shape: pl.BlockSpec(shape, lambda b, _s=shape: (0,) * len(_s))

    out = pl.pallas_call(
        kernel,
        out_shape=jax.ShapeDtypeStruct((B, 1, hidden), jnp.float32),
        grid=(B,),
        in_specs=[
            # per-batch patch tile; leading batch dim squeezed away
            pl.BlockSpec((None, ckk, spatial), lambda b: (b, 0, 0)),
            # parameters: constant block index -> DMA'd once, stay VMEM-resident
            full((c_out, ckk)),
            full((c_out, 1)),
            full((c_out * spatial, hidden)),
            full((1, hidden)),
            full((hidden, hidden)),
            full((1, hidden)),
        ],
        out_specs=pl.BlockSpec((None, 1, hidden), lambda b: (b, 0, 0)),
        scratch_shapes=[pltpu.VMEM((c_out, spatial), jnp.float32)],
        compiler_params=pltpu.CompilerParams(
            dimension_semantics=("parallel",),    # shard batch across TCs on v7x
        ),
    )(patches, wc, bc, w1, b1, w2, b2)
    return out.reshape(B, hidden)


# ----------------------------------------------------------------------------
# Deterministic parameter init (orthogonal, gain=sqrt(2) for ReLU; zero biases)
# ----------------------------------------------------------------------------
def init_params(key, obs_shape, hidden_size, kernel_size=3):
    """obs_shape is (channels, width, height) as in the PyTorch module; the
    input tensor itself is NCHW = (B, C, height, width).  flat_dim uses the
    product (W-k+1)*(H-k+1), which equals OH*OW for any (possibly non-square)
    observation, so it stays consistent with the forward pass."""
    C, in_w, in_h = obs_shape
    k = kernel_size
    c_out = hidden_size // 2
    flat_dim = c_out * (in_w - k + 1) * (in_h - k + 1)
    gain = math.sqrt(2.0)                         # nn.init.calculate_gain('relu')
    orth = jax.nn.initializers.orthogonal(scale=gain)

    k1, k2, k3 = jax.random.split(key, 3)
    w_conv = orth(k1, (c_out, C * k * k), jnp.float32).reshape(c_out, C, k, k)
    b_conv = jnp.zeros((c_out,), jnp.float32)
    w1 = orth(k2, (flat_dim, hidden_size), jnp.float32)
    b1 = jnp.zeros((hidden_size,), jnp.float32)
    w2 = orth(k3, (hidden_size, hidden_size), jnp.float32)
    b2 = jnp.zeros((hidden_size,), jnp.float32)
    return (w_conv, b_conv, w1, b1, w2, b2)


def reference_forward(x, params, kernel_size=3):
    """Pure-JAX reference matching PyTorch semantics (for sanity check)."""
    w_conv, b_conv, w1, b1, w2, b2 = params
    xs = x / 255.0
    conv = jax.lax.conv_general_dilated(
        xs, w_conv, window_strides=(1, 1), padding="VALID",
        dimension_numbers=("NCHW", "OIHW", "NCHW"))
    conv = jax.nn.relu(conv + b_conv[None, :, None, None])
    flat = conv.reshape(conv.shape[0], -1)        # PyTorch Flatten: (c, oy, ox)
    h = jax.nn.relu(flat @ w1 + b1)
    return jax.nn.relu(h @ w2 + b2)


if __name__ == "__main__":
    # args.hidden_size=32, args.use_orthogonal=True, args.use_ReLU=True
    obs_shape = (4, 16, 16)          # (channels, width, height)
    hidden_size = 32
    batch = 2

    key = jax.random.PRNGKey(0)
    kx, kp = jax.random.split(key)
    C, in_w, in_h = obs_shape
    x = jax.random.uniform(kx, (batch, C, in_h, in_w), jnp.float32,
                           minval=0.0, maxval=255.0)

    params = init_params(kp, obs_shape, hidden_size)
    prepared = prepare_params(params)             # one-time weight prep (hoisted)

    fwd = jax.jit(cnn_base_forward)
    out = jax.block_until_ready(fwd(x, prepared))

    ref = reference_forward(x, params)
    assert out.shape == (batch, hidden_size)
    assert jnp.allclose(out, ref, atol=1e-4, rtol=1e-4), "mismatch vs reference"

    print("KERNEL_OK")
</pallas_src>

<mosaic_0001>
module attributes {stable_mosaic.version = 11 : i64} {
  func.func @_fused_forward_kernel(%arg0: i32, %arg1: memref<1x36x196xf32, #tpu.memory_space<vmem>>, %arg2: memref<16x36xf32, #tpu.memory_space<vmem>>, %arg3: memref<16x1xf32, #tpu.memory_space<vmem>>, %arg4: memref<3136x32xf32, #tpu.memory_space<vmem>>, %arg5: memref<1x32xf32, #tpu.memory_space<vmem>>, %arg6: memref<32x32xf32, #tpu.memory_space<vmem>>, %arg7: memref<1x32xf32, #tpu.memory_space<vmem>>, %arg8: memref<1x1x32xf32, #tpu.memory_space<vmem>>, %arg9: memref<16x196xf32, #tpu.memory_space<vmem>>) attributes {dimension_semantics = [#tpu.dimension_semantics<parallel>], iteration_bounds = array<i64: 2>, scalar_prefetch = 0 : i64, scratch_operands = 1 : i64, tpu.core_type = #tpu.core_type<tc>, window_params = [{transform_indices = @transform_0, window_bounds = array<i64: 1, 36, 196>}, {pipeline_mode = #tpu.pipeline_mode<synchronous>, transform_indices = @transform_1, window_bounds = array<i64: 16, 36>}, {pipeline_mode = #tpu.pipeline_mode<synchronous>, transform_indices = @transform_2, window_bounds = array<i64: 16, 1>}, {pipeline_mode = #tpu.pipeline_mode<synchronous>, transform_indices = @transform_3, window_bounds = array<i64: 3136, 32>}, {pipeline_mode = #tpu.pipeline_mode<synchronous>, transform_indices = @transform_4, window_bounds = array<i64: 1, 32>}, {pipeline_mode = #tpu.pipeline_mode<synchronous>, transform_indices = @transform_5, window_bounds = array<i64: 32, 32>}, {pipeline_mode = #tpu.pipeline_mode<synchronous>, transform_indices = @transform_6, window_bounds = array<i64: 1, 32>}, {transform_indices = @transform_7, window_bounds = array<i64: 1, 1, 32>}]} {
    %c0 = arith.constant 0 : index
    %c0_0 = arith.constant 0 : index
    %0 = vector.load %arg2[%c0, %c0_0] : memref<16x36xf32, #tpu.memory_space<vmem>>, vector<16x36xf32>
    %c0_1 = arith.constant 0 : index
    %c0_2 = arith.constant 0 : index
    %c0_3 = arith.constant 0 : index
    %1 = vector.load %arg1[%c0_1, %c0_2, %c0_3] : memref<1x36x196xf32, #tpu.memory_space<vmem>>, vector<1x36x196xf32>
    %2 = vector.shape_cast %1 : vector<1x36x196xf32> to vector<36x196xf32>
    %cst = arith.constant dense<0.000000e+00> : vector<16x196xf32>
    %3 = tpu.matmul %0, %2, %cst {dimension_numbers = #tpu.dot_dimension_numbers<[1], [0], [0], [1], [0, 0, 1, 1], [], []>} : vector<16x36xf32>, vector<36x196xf32>, vector<16x196xf32> -> vector<16x196xf32>
    %c0_4 = arith.constant 0 : index
    %c0_5 = arith.constant 0 : index
    %4 = vector.load %arg3[%c0_4, %c0_5] : memref<16x1xf32, #tpu.memory_space<vmem>>, vector<16x1xf32>
    %5 = vector.broadcast %4 : vector<16x1xf32> to vector<16x196xf32>
    %6 = arith.addf %3, %5 : vector<16x196xf32>
    %cst_6 = arith.constant 0.000000e+00 : f32
    %7 = vector.broadcast %cst_6 : f32 to vector<16x196xf32>
    %8 = arith.maximumf %6, %7 : vector<16x196xf32>
    %c0_7 = arith.constant 0 : index
    %c0_8 = arith.constant 0 : index
    %9 = vector.load %arg9[%c0_7, %c0_8] : memref<16x196xf32, #tpu.memory_space<vmem>>, vector<16x196xf32>
    tpu.vector_store %arg9[%c0_7, %c0_8], %8 {strides = array<i32>} : memref<16x196xf32, #tpu.memory_space<vmem>>, vector<16x196xf32>,
    %c0_9 = arith.constant 0 : index
    %c0_10 = arith.constant 0 : index
    %10 = vector.load %arg5[%c0_9, %c0_10] : memref<1x32xf32, #tpu.memory_space<vmem>>, vector<1x32xf32>
    %c0_11 = arith.constant 0 : index
    %c0_12 = arith.constant 0 : index
    %11 = vector.load %arg9[%c0_11, %c0_12] : memref<16x196xf32, #tpu.memory_space<vmem>>, vector<1x196xf32>
    %c0_13 = arith.constant 0 : index
    %c0_14 = arith.constant 0 : index
    %12 = vector.load %arg4[%c0_13, %c0_14] : memref<3136x32xf32, #tpu.memory_space<vmem>>, vector<196x32xf32>
    %cst_15 = arith.constant dense<0.000000e+00> : vector<1x32xf32>
    %13 = tpu.matmul %11, %12, %cst_15 {dimension_numbers = #tpu.dot_dimension_numbers<[1], [0], [0], [1], [0, 0, 1, 1], [], []>} : vector<1x196xf32>, vector<196x32xf32>, vector<1x32xf32> -> vector<1x32xf32>
    %14 = arith.addf %10, %13 : vector<1x32xf32>
    %c1 = arith.constant 1 : index
    %c0_16 = arith.constant 0 : index
    %15 = vector.load %arg9[%c1, %c0_16] : memref<16x196xf32, #tpu.memory_space<vmem>>, vector<1x196xf32>
    %c196 = arith.constant 196 : index
    %c0_17 = arith.constant 0 : index
    %16 = vector.load %arg4[%c196, %c0_17] : memref<3136x32xf32, #tpu.memory_space<vmem>>, vector<196x32xf32>
    %cst_18 = arith.constant dense<0.000000e+00> : vector<1x32xf32>
    %17 = tpu.matmul %15, %16, %cst_18 {dimension_numbers = #tpu.dot_dimension_numbers<[1], [0], [0], [1], [0, 0, 1, 1], [], []>} : vector<1x196xf32>, vector<196x32xf32>, vector<1x32xf32> -> vector<1x32xf32>
    %18 = arith.addf %14, %17 : vector<1x32xf32>
    %c2 = arith.constant 2 : index
    %c0_19 = arith.constant 0 : index
    %19 = vector.load %arg9[%c2, %c0_19] : memref<16x196xf32, #tpu.memory_space<vmem>>, vector<1x196xf32>
    %c392 = arith.constant 392 : index
    %c0_20 = arith.constant 0 : index
    %20 = vector.load %arg4[%c392, %c0_20] : memref<3136x32xf32, #tpu.memory_space<vmem>>, vector<196x32xf32>
    %cst_21 = arith.constant dense<0.000000e+00> : vector<1x32xf32>
    %21 = tpu.matmul %19, %20, %cst_21 {dimension_numbers = #tpu.dot_dimension_numbers<[1], [0], [0], [1], [0, 0, 1, 1], [], []>} : vector<1x196xf32>, vector<196x32xf32>, vector<1x32xf32> -> vector<1x32xf32>
    %22 = arith.addf %18, %21 : vector<1x32xf32>
    %c3 = arith.constant 3 : index
    %c0_22 = arith.constant 0 : index
    %23 = vector.load %arg9[%c3, %c0_22] : memref<16x196xf32, #tpu.memory_space<vmem>>, vector<1x196xf32>
    %c588 = arith.constant 588 : index
    %c0_23 = arith.constant 0 : index
    %24 = vector.load %arg4[%c588, %c0_23] : memref<3136x32xf32, #tpu.memory_space<vmem>>, vector<196x32xf32>
    %cst_24 = arith.constant dense<0.000000e+00> : vector<1x32xf32>
    %25 = tpu.matmul %23, %24, %cst_24 {dimension_numbers = #tpu.dot_dimension_numbers<[1], [0], [0], [1], [0, 0, 1, 1], [], []>} : vector<1x196xf32>, vector<196x32xf32>, vector<1x32xf32> -> vector<1x32xf32>
    %26 = arith.addf %22, %25 : vector<1x32xf32>
    %c4 = arith.constant 4 : index
    %c0_25 = arith.constant 0 : index
    %27 = vector.load %arg9[%c4, %c0_25] : memref<16x196xf32, #tpu.memory_space<vmem>>, vector<1x196xf32>
    %c784 = arith.constant 784 : index
    %c0_26 = arith.constant 0 : index
    %28 = vector.load %arg4[%c784, %c0_26] : memref<3136x32xf32, #tpu.memory_space<vmem>>, vector<196x32xf32>
    %cst_27 = arith.constant dense<0.000000e+00> : vector<1x32xf32>
    %29 = tpu.matmul %27, %28, %cst_27 {dimension_numbers = #tpu.dot_dimension_numbers<[1], [0], [0], [1], [0, 0, 1, 1], [], []>} : vector<1x196xf32>, vector<196x32xf32>, vector<1x32xf32> -> vector<1x32xf32>
    %30 = arith.addf %26, %29 : vector<1x32xf32>
    %c5 = arith.constant 5 : index
    %c0_28 = arith.constant 0 : index
    %31 = vector.load %arg9[%c5, %c0_28] : memref<16x196xf32, #tpu.memory_space<vmem>>, vector<1x196xf32>
    %c980 = arith.constant 980 : index
    %c0_29 = arith.constant 0 : index
    %32 = vector.load %arg4[%c980, %c0_29] : memref<3136x32xf32, #tpu.memory_space<vmem>>, vector<196x32xf32>
    %cst_30 = arith.constant dense<0.000000e+00> : vector<1x32xf32>
    %33 = tpu.matmul %31, %32, %cst_30 {dimension_numbers = #tpu.dot_dimension_numbers<[1], [0], [0], [1], [0, 0, 1, 1], [], []>} : vector<1x196xf32>, vector<196x32xf32>, vector<1x32xf32> -> vector<1x32xf32>
    %34 = arith.addf %30, %33 : vector<1x32xf32>
    %c6 = arith.constant 6 : index
    %c0_31 = arith.constant 0 : index
    %35 = vector.load %arg9[%c6, %c0_31] : memref<16x196xf32, #tpu.memory_space<vmem>>, vector<1x196xf32>
    %c1176 = arith.constant 1176 : index
    %c0_32 = arith.constant 0 : index
    %36 = vector.load %arg4[%c1176, %c0_32] : memref<3136x32xf32, #tpu.memory_space<vmem>>, vector<196x32xf32>
    %cst_33 = arith.constant dense<0.000000e+00> : vector<1x32xf32>
    %37 = tpu.matmul %35, %36, %cst_33 {dimension_numbers = #tpu.dot_dimension_numbers<[1], [0], [0], [1], [0, 0, 1, 1], [], []>} : vector<1x196xf32>, vector<196x32xf32>, vector<1x32xf32> -> vector<1x32xf32>
    %38 = arith.addf %34, %37 : vector<1x32xf32>
    %c7 = arith.constant 7 : index
    %c0_34 = arith.constant 0 : index
    %39 = vector.load %arg9[%c7, %c0_34] : memref<16x196xf32, #tpu.memory_space<vmem>>, vector<1x196xf32>
    %c1372 = arith.constant 1372 : index
    %c0_35 = arith.constant 0 : index
    %40 = vector.load %arg4[%c1372, %c0_35] : memref<3136x32xf32, #tpu.memory_space<vmem>>, vector<196x32xf32>
    %cst_36 = arith.constant dense<0.000000e+00> : vector<1x32xf32>
    %41 = tpu.matmul %39, %40, %cst_36 {dimension_numbers = #tpu.dot_dimension_numbers<[1], [0], [0], [1], [0, 0, 1, 1], [], []>} : vector<1x196xf32>, vector<196x32xf32>, vector<1x32xf32> -> vector<1x32xf32>
    %42 = arith.addf %38, %41 : vector<1x32xf32>
    %c8 = arith.constant 8 : index
    %c0_37 = arith.constant 0 : index
    %43 = vector.load %arg9[%c8, %c0_37] : memref<16x196xf32, #tpu.memory_space<vmem>>, vector<1x196xf32>
    %c1568 = arith.constant 1568 : index
    %c0_38 = arith.constant 0 : index
    %44 = vector.load %arg4[%c1568, %c0_38] : memref<3136x32xf32, #tpu.memory_space<vmem>>, vector<196x32xf32>
    %cst_39 = arith.constant dense<0.000000e+00> : vector<1x32xf32>
    %45 = tpu.matmul %43, %44, %cst_39 {dimension_numbers = #tpu.dot_dimension_numbers<[1], [0], [0], [1], [0, 0, 1, 1], [], []>} : vector<1x196xf32>, vector<196x32xf32>, vector<1x32xf32> -> vector<1x32xf32>
    %46 = arith.addf %42, %45 : vector<1x32xf32>
    %c9 = arith.constant 9 : index
    %c0_40 = arith.constant 0 : index
    %47 = vector.load %arg9[%c9, %c0_40] : memref<16x196xf32, #tpu.memory_space<vmem>>, vector<1x196xf32>
    %c1764 = arith.constant 1764 : index
    %c0_41 = arith.constant 0 : index
    %48 = vector.load %arg4[%c1764, %c0_41] : memref<3136x32xf32, #tpu.memory_space<vmem>>, vector<196x32xf32>
    %cst_42 = arith.constant dense<0.000000e+00> : vector<1x32xf32>
    %49 = tpu.matmul %47, %48, %cst_42 {dimension_numbers = #tpu.dot_dimension_numbers<[1], [0], [0], [1], [0, 0, 1, 1], [], []>} : vector<1x196xf32>, vector<196x32xf32>, vector<1x32xf32> -> vector<1x32xf32>
    %50 = arith.addf %46, %49 : vector<1x32xf32>
    %c10 = arith.constant 10 : index
    %c0_43 = arith.constant 0 : index
    %51 = vector.load %arg9[%c10, %c0_43] : memref<16x196xf32, #tpu.memory_space<vmem>>, vector<1x196xf32>
    %c1960 = arith.constant 1960 : index
    %c0_44 = arith.constant 0 : index
    %52 = vector.load %arg4[%c1960, %c0_44] : memref<3136x32xf32, #tpu.memory_space<vmem>>, vector<196x32xf32>
    %cst_45 = arith.constant dense<0.000000e+00> : vector<1x32xf32>
    %53 = tpu.matmul %51, %52, %cst_45 {dimension_numbers = #tpu.dot_dimension_numbers<[1], [0], [0], [1], [0, 0, 1, 1], [], []>} : vector<1x196xf32>, vector<196x32xf32>, vector<1x32xf32> -> vector<1x32xf32>
    %54 = arith.addf %50, %53 : vector<1x32xf32>
    %c11 = arith.constant 11 : index
    %c0_46 = arith.constant 0 : index
    %55 = vector.load %arg9[%c11, %c0_46] : memref<16x196xf32, #tpu.memory_space<vmem>>, vector<1x196xf32>
    %c2156 = arith.constant 2156 : index
    %c0_47 = arith.constant 0 : index
    %56 = vector.load %arg4[%c2156, %c0_47] : memref<3136x32xf32, #tpu.memory_space<vmem>>, vector<196x32xf32>
    %cst_48 = arith.constant dense<0.000000e+00> : vector<1x32xf32>
    %57 = tpu.matmul %55, %56, %cst_48 {dimension_numbers = #tpu.dot_dimension_numbers<[1], [0], [0], [1], [0, 0, 1, 1], [], []>} : vector<1x196xf32>, vector<196x32xf32>, vector<1x32xf32> -> vector<1x32xf32>
    %58 = arith.addf %54, %57 : vector<1x32xf32>
    %c12 = arith.constant 12 : index
    %c0_49 = arith.constant 0 : index
    %59 = vector.load %arg9[%c12, %c0_49] : memref<16x196xf32, #tpu.memory_space<vmem>>, vector<1x196xf32>
    %c2352 = arith.constant 2352 : index
    %c0_50 = arith.constant 0 : index
    %60 = vector.load %arg4[%c2352, %c0_50] : memref<3136x32xf32, #tpu.memory_space<vmem>>, vector<196x32xf32>
    %cst_51 = arith.constant dense<0.000000e+00> : vector<1x32xf32>
    %61 = tpu.matmul %59, %60, %cst_51 {dimension_numbers = #tpu.dot_dimension_numbers<[1], [0], [0], [1], [0, 0, 1, 1], [], []>} : vector<1x196xf32>, vector<196x32xf32>, vector<1x32xf32> -> vector<1x32xf32>
    %62 = arith.addf %58, %61 : vector<1x32xf32>
    %c13 = arith.constant 13 : index
    %c0_52 = arith.constant 0 : index
    %63 = vector.load %arg9[%c13, %c0_52] : memref<16x196xf32, #tpu.memory_space<vmem>>, vector<1x196xf32>
    %c2548 = arith.constant 2548 : index
    %c0_53 = arith.constant 0 : index
    %64 = vector.load %arg4[%c2548, %c0_53] : memref<3136x32xf32, #tpu.memory_space<vmem>>, vector<196x32xf32>
    %cst_54 = arith.constant dense<0.000000e+00> : vector<1x32xf32>
    %65 = tpu.matmul %63, %64, %cst_54 {dimension_numbers = #tpu.dot_dimension_numbers<[1], [0], [0], [1], [0, 0, 1, 1], [], []>} : vector<1x196xf32>, vector<196x32xf32>, vector<1x32xf32> -> vector<1x32xf32>
    %66 = arith.addf %62, %65 : vector<1x32xf32>
    %c14 = arith.constant 14 : index
    %c0_55 = arith.constant 0 : index
    %67 = vector.load %arg9[%c14, %c0_55] : memref<16x196xf32, #tpu.memory_space<vmem>>, vector<1x196xf32>
    %c2744 = arith.constant 2744 : index
    %c0_56 = arith.constant 0 : index
    %68 = vector.load %arg4[%c2744, %c0_56] : memref<3136x32xf32, #tpu.memory_space<vmem>>, vector<196x32xf32>
    %cst_57 = arith.constant dense<0.000000e+00> : vector<1x32xf32>
    %69 = tpu.matmul %67, %68, %cst_57 {dimension_numbers = #tpu.dot_dimension_numbers<[1], [0], [0], [1], [0, 0, 1, 1], [], []>} : vector<1x196xf32>, vector<196x32xf32>, vector<1x32xf32> -> vector<1x32xf32>
    %70 = arith.addf %66, %69 : vector<1x32xf32>
    %c15 = arith.constant 15 : index
    %c0_58 = arith.constant 0 : index
    %71 = vector.load %arg9[%c15, %c0_58] : memref<16x196xf32, #tpu.memory_space<vmem>>, vector<1x196xf32>
    %c2940 = arith.constant 2940 : index
    %c0_59 = arith.constant 0 : index
    %72 = vector.load %arg4[%c2940, %c0_59] : memref<3136x32xf32, #tpu.memory_space<vmem>>, vector<196x32xf32>
    %cst_60 = arith.constant dense<0.000000e+00> : vector<1x32xf32>
    %73 = tpu.matmul %71, %72, %cst_60 {dimension_numbers = #tpu.dot_dimension_numbers<[1], [0], [0], [1], [0, 0, 1, 1], [], []>} : vector<1x196xf32>, vector<196x32xf32>, vector<1x32xf32> -> vector<1x32xf32>
    %74 = arith.addf %70, %73 : vector<1x32xf32>
    %cst_61 = arith.constant 0.000000e+00 : f32
    %75 = vector.broadcast %cst_61 : f32 to vector<1x32xf32>
    %76 = arith.maximumf %74, %75 : vector<1x32xf32>
    %c0_62 = arith.constant 0 : index
    %c0_63 = arith.constant 0 : index
    %77 = vector.load %arg6[%c0_62, %c0_63] : memref<32x32xf32, #tpu.memory_space<vmem>>, vector<32x32xf32>
    %cst_64 = arith.constant dense<0.000000e+00> : vector<1x32xf32>
    %78 = tpu.matmul %76, %77, %cst_64 {dimension_numbers = #tpu.dot_dimension_numbers<[1], [0], [0], [1], [0, 0, 1, 1], [], []>} : vector<1x32xf32>, vector<32x32xf32>, vector<1x32xf32> -> vector<1x32xf32>
    %c0_65 = arith.constant 0 : index
    %c0_66 = arith.constant 0 : index
    %79 = vector.load %arg7[%c0_65, %c0_66] : memref<1x32xf32, #tpu.memory_space<vmem>>, vector<1x32xf32>
    %80 = arith.addf %78, %79 : vector<1x32xf32>
    %cst_67 = arith.constant 0.000000e+00 : f32
    %81 = vector.broadcast %cst_67 : f32 to vector<1x32xf32>
    %82 = arith.maximumf %80, %81 : vector<1x32xf32>
    %c0_68 = arith.constant 0 : index
    %c0_69 = arith.constant 0 : index
    %c0_70 = arith.constant 0 : index
    %83 = vector.load %arg8[%c0_68, %c0_69, %c0_70] : memref<1x1x32xf32, #tpu.memory_space<vmem>>, vector<1x1x32xf32>
    %84 = vector.shape_cast %83 : vector<1x1x32xf32> to vector<1x32xf32>
    %85 = vector.shape_cast %82 : vector<1x32xf32> to vector<1x1x32xf32>
    tpu.vector_store %arg8[%c0_68, %c0_69, %c0_70], %85 {strides = array<i32>} : memref<1x1x32xf32, #tpu.memory_space<vmem>>, vector<1x1x32xf32>,
    return
  }
  func.func @transform_0(%arg0: i32) -> (i32, i32, i32) {
    %c0_i32 = arith.constant 0 : i32
    %c0_i32_0 = arith.constant 0 : i32
    %c0_i32_1 = arith.constant 0 : i32
    return %arg0, %c0_i32, %c0_i32_0 : i32, i32, i32
  }
  func.func @transform_1(%arg0: i32) -> (i32, i32) {
    %c0_i32 = arith.constant 0 : i32
    %c0_i32_0 = arith.constant 0 : i32
    %c0_i32_1 = arith.constant 0 : i32
    return %c0_i32, %c0_i32_0 : i32, i32
  }
  func.func @transform_2(%arg0: i32) -> (i32, i32) {
    %c0_i32 = arith.constant 0 : i32
    %c0_i32_0 = arith.constant 0 : i32
    %c0_i32_1 = arith.constant 0 : i32
    return %c0_i32, %c0_i32_0 : i32, i32
  }
  func.func @transform_3(%arg0: i32) -> (i32, i32) {
    %c0_i32 = arith.constant 0 : i32
    %c0_i32_0 = arith.constant 0 : i32
    %c0_i32_1 = arith.constant 0 : i32
    return %c0_i32, %c0_i32_0 : i32, i32
  }
  func.func @transform_4(%arg0: i32) -> (i32, i32) {
    %c0_i32 = arith.constant 0 : i32
    %c0_i32_0 = arith.constant 0 : i32
    %c0_i32_1 = arith.constant 0 : i32
    return %c0_i32, %c0_i32_0 : i32, i32
  }
  func.func @transform_5(%arg0: i32) -> (i32, i32) {
    %c0_i32 = arith.constant 0 : i32
    %c0_i32_0 = arith.constant 0 : i32
    %c0_i32_1 = arith.constant 0 : i32
    return %c0_i32, %c0_i32_0 : i32, i32
  }
  func.func @transform_6(%arg0: i32) -> (i32, i32) {
    %c0_i32 = arith.constant 0 : i32
    %c0_i32_0 = arith.constant 0 : i32
    %c0_i32_1 = arith.constant 0 : i32
    return %c0_i32, %c0_i32_0 : i32, i32
  }
  func.func @transform_7(%arg0: i32) -> (i32, i32, i32) {
    %c0_i32 = arith.constant 0 : i32
    %c0_i32_0 = arith.constant 0 : i32
    %c0_i32_1 = arith.constant 0 : i32
    return %arg0, %c0_i32, %c0_i32_0 : i32, i32, i32
  }
}

</mosaic_0001>

<llo_original>
// kernel: cnn_base_forward.1
$region0: #{cnn_base_forward.1}
  #allocation0 [shape = 'u32[]', space=smem, size = 0x4, offset = 0x4, fixed_abs, tag = 'smem constant byte address 0x4 - core index']
  #allocation1 [shape = 'u32[144,128]{1,0:T(1,128)}', space=vmem, size = 0x12000, scoped, tag = 'internal scratch']
  #allocation2 [shape = 'f32[16,196]{1,0:T(8,128)}', space=vmem, size = 0x4000, scoped, tag = 'scratch operand']
  %s0 = inlined_call_operand.vmem [shape: f32[2,36,196], index: 0, kind: input, shape index: {}]
  %s1 = inlined_call_operand.vmem [shape: f32[16,36], index: 1, kind: input, shape index: {}]
  %s2 = inlined_call_operand.vmem [shape: f32[16,1], index: 2, kind: input, shape index: {}]
  %s3 = inlined_call_operand.vmem [shape: f32[3136,32], index: 3, kind: input, shape index: {}]
  %s4 = inlined_call_operand.vmem [shape: f32[1,32], index: 4, kind: input, shape index: {}]
  %s5 = inlined_call_operand.vmem [shape: f32[32,32], index: 5, kind: input, shape index: {}]
  %s6 = inlined_call_operand.vmem [shape: f32[1,32], index: 6, kind: input, shape index: {}]
  %s7 = inlined_call_operand.hbm [shape: f32[2,1,32], index: 7, kind: output, shape index: {}]
  %s8 = sld [smem:[#allocation0]]
  $region61: #{cnn_base_forward.1} parent=0
    _
  %s10 = ssub.s32 1, %s8
  %s11 = scalar_select 0, %s10, %s8
  $region1: #{cnn_base_forward.1} parent=0
    #allocation3 [shape = 'u8[1024]{0}', space=vmem, size = 0x400, scoped, tag = 'output window, operand 0']
    #allocation4 [shape = 's32[2]{0}', space=sflag, size = 0x8, scoped, tag = 'scoped memory for cnn_base_forward.1']
    %12 = vsyncpa [#allocation4], 0
    %s13 = scalar_lea.sflag [#allocation4], 1
    %14 = vsyncpa %s13, 0
    loop: start=0, step=1, limit=4
    $region2: #{cnn_base_forward.1} parent=1 // loop_pre_header
      _
    $region3: #{cnn_base_forward.1} parent=1 // loop_header
      %s16 = sphi 0, %s20
      %p17 = scmp.ge.s32.totalorder %s16, 4
      %s26 = sphi 0, %s28
      %s29 = sphi 0, %s26
      %s30 = sphi 0, %s29
      %s46 = sphi 0, %s30
      %s50 = sphi 0, %s50
      %s52 = sphi 0, %s50
      %s53 = sphi 0, %s52
      %s67 = sphi 0, %s53
      %s71 = sphi 0, %s71
      %s73 = sphi 0, %s71
      %s74 = sphi 0, %s73
      %s88 = sphi 0, %s74
      %s92 = sphi 0, %s92
      %s94 = sphi 0, %s92
      %s95 = sphi 0, %s94
      %s109 = sphi 0, %s95
      %s113 = sphi 0, %s113
      %s115 = sphi 0, %s113
      %s116 = sphi 0, %s115
      %s130 = sphi 0, %s116
      %s134 = sphi 0, %s134
      %s136 = sphi 0, %s134
      %s137 = sphi 0, %s136
      %s151 = sphi 0, %s137
      %s155 = sphi 0, %s155
      %s157 = sphi 0, %s155
      %s158 = sphi 0, %s157
      %s172 = sphi 0, %s158
      %s178 = sphi 0, %s180
      %s181 = sphi 0, %s178
      %s182 = sphi 0, %s181
      %s198 = sphi 0, %s182
    $region4: #{cnn_base_forward.1} parent=1 // loop_header_branch
      %19 = sbr.rel (%p17) target = $region8
    $region5: #{cnn_base_forward.1} parent=1 // loop_body
      %s21 = ssub.s32 %s16, 1
      %s22 = ssub.s32 %s16, 2
      %s23 = sadd.s32 %s16, 1
      %s24 = ssub.s32 %s16, %s23
      %p25 = scmp.eq.s32.totalorder %s24, 0
      %s27 = sadd.s32 %s26, 1
      %s28 = scalar_select %p25, %s26, %s27
      %p31 = pneg %p25
      %p32 = scmp.eq.s32.totalorder %s16, 1
      %p33 = por %p31, %p32
      %p34 = scmp.ne.s32.totalorder %s26, %s29
      %p35 = scmp.eq.s32.totalorder %s16, 0
      %p36 = por %p34, %p35
      %p37 = scmp.ne.s32.totalorder %s26, %s29
      %p38 = scmp.eq.s32.totalorder %s21, 1
      %p39 = por %p37, %p38
      %p40 = scmp.ne.s32.totalorder %s29, %s30
      %p41 = scmp.eq.s32.totalorder %s21, 0
      %p42 = por %p40, %p41
      %p43 = scmp.ne.s32.totalorder %s29, %s30
      %p44 = scmp.eq.s32.totalorder %s22, 1
      %p45 = por %p43, %p44
      %p47 = scmp.ne.s32.totalorder %s30, %s46
      %p48 = scmp.eq.s32.totalorder %s22, 0
      %p49 = por %p47, %p48
      %s51 = sadd.s32 %s50, 1
      %p54 = scmp.eq.s32.totalorder %s16, 1
      %p55 = scmp.ne.s32.totalorder %s50, %s52
      %p56 = scmp.eq.s32.totalorder %s16, 0
      %p57 = por %p55, %p56
      %p58 = scmp.ne.s32.totalorder %s50, %s52
      %p59 = scmp.eq.s32.totalorder %s21, 1
      %p60 = por %p58, %p59
      %p61 = scmp.ne.s32.totalorder %s52, %s53
      %p62 = scmp.eq.s32.totalorder %s21, 0
      %p63 = por %p61, %p62
      %p64 = scmp.ne.s32.totalorder %s52, %s53
      %p65 = scmp.eq.s32.totalorder %s22, 1
      %p66 = por %p64, %p65
      %p68 = scmp.ne.s32.totalorder %s53, %s67
      %p69 = scmp.eq.s32.totalorder %s22, 0
      %p70 = por %p68, %p69
      %s72 = sadd.s32 %s71, 1
      %p75 = scmp.eq.s32.totalorder %s16, 1
      %p76 = scmp.ne.s32.totalorder %s71, %s73
      %p77 = scmp.eq.s32.totalorder %s16, 0
      %p78 = por %p76, %p77
      %p79 = scmp.ne.s32.totalorder %s71, %s73
      %p80 = scmp.eq.s32.totalorder %s21, 1
      %p81 = por %p79, %p80
      %p82 = scmp.ne.s32.totalorder %s73, %s74
      %p83 = scmp.eq.s32.totalorder %s21, 0
      %p84 = por %p82, %p83
      %p85 = scmp.ne.s32.totalorder %s73, %s74
      %p86 = scmp.eq.s32.totalorder %s22, 1
      %p87 = por %p85, %p86
      %p89 = scmp.ne.s32.totalorder %s74, %s88
      %p90 = scmp.eq.s32.totalorder %s22, 0
      %p91 = por %p89, %p90
      %s93 = sadd.s32 %s92, 1
      %p96 = scmp.eq.s32.totalorder %s16, 1
      %p97 = scmp.ne.s32.totalorder %s92, %s94
      %p98 = scmp.eq.s32.totalorder %s16, 0
      %p99 = por %p97, %p98
      %p100 = scmp.ne.s32.totalorder %s92, %s94
      %p101 = scmp.eq.s32.totalorder %s21, 1
      %p102 = por %p100, %p101
      %p103 = scmp.ne.s32.totalorder %s94, %s95
      %p104 = scmp.eq.s32.totalorder %s21, 0
      %p105 = por %p103, %p104
      %p106 = scmp.ne.s32.totalorder %s94, %s95
      %p107 = scmp.eq.s32.totalorder %s22, 1
      %p108 = por %p106, %p107
      %p110 = scmp.ne.s32.totalorder %s95, %s109
      %p111 = scmp.eq.s32.totalorder %s22, 0
      %p112 = por %p110, %p111
      %s114 = sadd.s32 %s113, 1
      %p117 = scmp.eq.s32.totalorder %s16, 1
      %p118 = scmp.ne.s32.totalorder %s113, %s115
      %p119 = scmp.eq.s32.totalorder %s16, 0
      %p120 = por %p118, %p119
      %p121 = scmp.ne.s32.totalorder %s113, %s115
      %p122 = scmp.eq.s32.totalorder %s21, 1
      %p123 = por %p121, %p122
      %p124 = scmp.ne.s32.totalorder %s115, %s116
      %p125 = scmp.eq.s32.totalorder %s21, 0
      %p126 = por %p124, %p125
      %p127 = scmp.ne.s32.totalorder %s115, %s116
      %p128 = scmp.eq.s32.totalorder %s22, 1
      %p129 = por %p127, %p128
      %p131 = scmp.ne.s32.totalorder %s116, %s130
      %p132 = scmp.eq.s32.totalorder %s22, 0
      %p133 = por %p131, %p132
      %s135 = sadd.s32 %s134, 1
      %p138 = scmp.eq.s32.totalorder %s16, 1
      %p139 = scmp.ne.s32.totalorder %s134, %s136
      %p140 = scmp.eq.s32.totalorder %s16, 0
      %p141 = por %p139, %p140
      %p142 = scmp.ne.s32.totalorder %s134, %s136
      %p143 = scmp.eq.s32.totalorder %s21, 1
      %p144 = por %p142, %p143
      %p145 = scmp.ne.s32.totalorder %s136, %s137
      %p146 = scmp.eq.s32.totalorder %s21, 0
      %p147 = por %p145, %p146
      %p148 = scmp.ne.s32.totalorder %s136, %s137
      %p149 = scmp.eq.s32.totalorder %s22, 1
      %p150 = por %p148, %p149
      %p152 = scmp.ne.s32.totalorder %s137, %s151
      %p153 = scmp.eq.s32.totalorder %s22, 0
      %p154 = por %p152, %p153
      %s156 = sadd.s32 %s155, 1
      %p159 = scmp.eq.s32.totalorder %s16, 1
      %p160 = scmp.ne.s32.totalorder %s155, %s157
      %p161 = scmp.eq.s32.totalorder %s16, 0
      %p162 = por %p160, %p161
      %p163 = scmp.ne.s32.totalorder %s155, %s157
      %p164 = scmp.eq.s32.totalorder %s21, 1
      %p165 = por %p163, %p164
      %p166 = scmp.ne.s32.totalorder %s157, %s158
      %p167 = scmp.eq.s32.totalorder %s21, 0
      %p168 = por %p166, %p167
      %p169 = scmp.ne.s32.totalorder %s157, %s158
      %p170 = scmp.eq.s32.totalorder %s22, 1
      %p171 = por %p169, %p170
      %p173 = scmp.ne.s32.totalorder %s158, %s172
      %p174 = scmp.eq.s32.totalorder %s22, 0
      %p175 = por %p173, %p174
      %s176 = ssub.s32 %s16, %s23
      %p177 = scmp.eq.s32.totalorder %s176, 0
      %s179 = sadd.s32 %s178, 1
      %s180 = scalar_select %p177, %s178, %s179
      %p183 = pneg %p177
      %p184 = scmp.eq.s32.totalorder %s16, 1
      %p185 = por %p183, %p184
      %p186 = scmp.ne.s32.totalorder %s178, %s181
      %p187 = scmp.eq.s32.totalorder %s16, 0
      %p188 = por %p186, %p187
      %p189 = scmp.ne.s32.totalorder %s178, %s181
      %p190 = scmp.eq.s32.totalorder %s21, 1
      %p191 = por %p189, %p190
      %p192 = scmp.ne.s32.totalorder %s181, %s182
      %p193 = scmp.eq.s32.totalorder %s21, 0
      %p194 = por %p192, %p193
      %p195 = scmp.ne.s32.totalorder %s181, %s182
      %p196 = scmp.eq.s32.totalorder %s22, 1
      %p197 = por %p195, %p196
      %p199 = scmp.ne.s32.totalorder %s182, %s198
      %p200 = scmp.eq.s32.totalorder %s22, 0
      %p201 = por %p199, %p200
      %p202 = scmp.le.s32.totalorder 1, %s16
      %p203 = scmp.lt.s32.totalorder %s16, 3
      %p204 = pnand %p202, %p203
      %p205 = pneg %p204
      // Predicated region
      $region9: #{cnn_base_forward.1} parent=5 // pred_check
        _
      $region10: #{cnn_base_forward.1} parent=5 // pred_check_branch
        %207 = sbr.rel (%p204) target = $region12
      $region11: #{cnn_base_forward.1} parent=5 // pred_region
        %s208 = ssub.s32 %s16, 1
        // Predicated region
        $region13: #{cnn_base_forward.1} parent=11 // pred_check
          %p209 = pneg %p63
        $region14: #{cnn_base_forward.1} parent=11 // pred_check_branch
          %211 = sbr.rel (%p209) target = $region16
        $region15: #{cnn_base_forward.1} parent=11 // pred_region
          _
        $region16: #{cnn_base_forward.1} parent=11 // pred_fallthru
          _
        // Predicated region
        $region17: #{cnn_base_forward.1} parent=11 // pred_check
          %p212 = pneg %p84
        $region18: #{cnn_base_forward.1} parent=11 // pred_check_branch
          %214 = sbr.rel (%p212) target = $region20
        $region19: #{cnn_base_forward.1} parent=11 // pred_region
          _
        $region20: #{cnn_base_forward.1} parent=11 // pred_fallthru
          _
        // Predicated region
        $region21: #{cnn_base_forward.1} parent=11 // pred_check
          %p215 = pneg %p105
        $region22: #{cnn_base_forward.1} parent=11 // pred_check_branch
          %217 = sbr.rel (%p215) target = $region24
        $region23: #{cnn_base_forward.1} parent=11 // pred_region
          _
        $region24: #{cnn_base_forward.1} parent=11 // pred_fallthru
          _
        // Predicated region
        $region25: #{cnn_base_forward.1} parent=11 // pred_check
          %p218 = pneg %p126
        $region26: #{cnn_base_forward.1} parent=11 // pred_check_branch
          %220 = sbr.rel (%p218) target = $region28
        $region27: #{cnn_base_forward.1} parent=11 // pred_region
          _
        $region28: #{cnn_base_forward.1} parent=11 // pred_fallthru
          _
        // Predicated region
        $region29: #{cnn_base_forward.1} parent=11 // pred_check
          %p221 = pneg %p147
        $region30: #{cnn_base_forward.1} parent=11 // pred_check_branch
          %223 = sbr.rel (%p221) target = $region32
        $region31: #{cnn_base_forward.1} parent=11 // pred_region
          _
        $region32: #{cnn_base_forward.1} parent=11 // pred_fallthru
          _
        // Predicated region
        $region33: #{cnn_base_forward.1} parent=11 // pred_check
          %p224 = pneg %p168
        $region34: #{cnn_base_forward.1} parent=11 // pred_check_branch
          %226 = sbr.rel (%p224) target = $region36
        $region35: #{cnn_base_forward.1} parent=11 // pred_region
          _
        $region36: #{cnn_base_forward.1} parent=11 // pred_fallthru
          _
      $region12: #{cnn_base_forward.1} parent=5 // pred_fallthru
        _
      %p227 = scmp.lt.s32.totalorder %s16, 2
      // Predicated region
      $region37: #{cnn_base_forward.1} parent=5 // pred_check
        %p228 = pneg %p227
      $region38: #{cnn_base_forward.1} parent=5 // pred_check_branch
        %230 = sbr.rel (%p228) target = $region40
      $region39: #{cnn_base_forward.1} parent=5 // pred_region
        // Predicated region
        $region41: #{cnn_base_forward.1} parent=39 // pred_check
          %p231 = pneg %p36
        $region42: #{cnn_base_forward.1} parent=39 // pred_check_branch
          %233 = sbr.rel (%p231) target = $region44
        $region43: #{cnn_base_forward.1} parent=39 // pred_region
          %p234 = scmp.lt.s32.totalorder %s16, 1
          %s235 = scalar_select %p234, %s16, 1
          %s236 = smul.addr %s235, 10
          %s237 = smul.addr %s236, 8
          %s238 = scalar_lea.vmem %s0, %s237
        $region44: #{cnn_base_forward.1} parent=39 // pred_fallthru
          _
      $region40: #{cnn_base_forward.1} parent=5 // pred_fallthru
        _
      %p239 = scmp.le.s32.totalorder 1, %s16
      %p240 = scmp.lt.s32.totalorder %s16, 3
      %p241 = pnand %p239, %p240
      %p242 = pneg %p241
      // Predicated region
      $region45: #{cnn_base_forward.1} parent=5 // pred_check
        _
      $region46: #{cnn_base_forward.1} parent=5 // pred_check_branch
        %244 = sbr.rel (%p241) target = $region48
      $region47: #{cnn_base_forward.1} parent=5 // pred_region
        %s245 = ssub.s32 %s16, 1
        %p246 = scmp.lt.s32.totalorder %s21, 1
        %s247 = scalar_select %p246, %s21, 1
        %s248 = smul.addr %s247, 10
        %s249 = smul.addr %s248, 8
        %s250 = scalar_lea.vmem %s0, %s249
        %p251 = pneg %p42
        %p252 = pneg %p39
        %p253 = pneg %p63
        %p254 = pneg %p60
        %p255 = pneg %p84
        %p256 = pneg %p81
        %p257 = pneg %p105
        %p258 = pneg %p102
        %p259 = pneg %p126
        %p260 = pneg %p123
        %p261 = pneg %p147
        %p262 = pneg %p144
        %p263 = pneg %p168
        %p264 = pneg %p165
        %p265 = pneg %p194
        %p266 = pneg %p191
        %s267 = sand.u32 %s181, 1
        %s268 = scalar_lea.sflag [#allocation4], %s267
        %s269 = sand.u32 %s181, 1
        %s270 = scalar_lea.vmem [#allocation3], %s269
        %p271 = scmp.lt.s32.totalorder %s21, 1
        %s272 = scalar_select %p271, %s21, 1
        %s273 = smul.addr %s272, 10
        %s274 = smul.addr %s273, 8
        %s275 = scalar_lea.vmem %s0, %s274
        %v276 = vld [vmem:[%s1] sm:$0xff]
        %v277 = vld [vmem:[%s1 + $0x8] sm:$0xff]
        %v278 = vld [vmem:[%s275] sm:$0xff]
        %v279 = vld [vmem:[%s275 + $0x8] sm:$0xff]
        %v280 = vld [vmem:[%s275 + $0x10] sm:$0xff]
        %v281 = vld [vmem:[%s275 + $0x18] sm:$0xff]
        %v282 = vld [vmem:[%s275 + $0x20] sm:$0xff]
        %v283 = vld [vmem:[%s275 + $0x28] sm:$0xff]
        %v284 = vld [vmem:[%s275 + $0x30] sm:$0xff]
        %v285 = vld [vmem:[%s275 + $0x38] sm:$0xff]
        %v286 = vld [vmem:[%s275 + $0x40] sm:$0xf]
        %v287 = vld [vmem:[%s275 + $0x48] sm:$0xf]
        %v288 = vld [vmem:[%s2] sm:$0xff]
        %v289 = vld [vmem:[%s2 + $0x8] sm:$0xff]
        %291 = vset.pattern.permute.xlu0 0
        %292 = vperm.xlu0 %291, %v288
        %v293 = vpop.permute.xlu0 %292
        %296 = vset.pattern.permute.xlu0 0
        %297 = vperm.xlu0 %296, %v289
        %v298 = vpop.permute.xlu0 %297
        %vm300 = vcmask 293888
        %v302 = vsel %vm300, %v276, 0
        %v305 = vsel %vm300, %v277, 0
        %vm307 = vcmask 1043456
        %v309 = vsel %vm307, %v286, 0
        %v312 = vsel %vm307, %v287, 0
        %314 = vmatprep.subr.mxu0 %v279
        %315 = vmatpush1.msra.mxu0 %v278
        %316 = vmatprep.subr.mxu0 %v281
        %317 = vmatpush1.msra.mxu0 %v280
        %318 = vmatprep.subr.mxu0 %v283
        %319 = vmatpush1.msra.mxu0 %v282
        %320 = vmatprep.subr.mxu0 %v285
        %321 = vmatpush1.msra.mxu0 %v284
        %322 = vmatprep.subr.mxu0 %v312
        %323 = vmatpush1.msra.mxu0 %v309
        %324 = vmatprep.subr.mxu0 0.0
        %325 = vmatpush1.msra.mxu0 0.0
        %326 = vmatprep.subr.mxu0 0.0
        %327 = vmatpush1.msra.mxu0 0.0
        %328 = vmatprep.subr.mxu0 0.0
        %329 = vmatpush1.msra.mxu0 0.0
        %330 = vmatprep.subr.mxu0 0.0
        %331 = vmatpush1.msra.mxu0 0.0
        %332 = vmatprep.subr.mxu0 0.0
        %333 = vmatpush1.msra.mxu0 0.0
        %334 = vmatprep.subr.mxu0 0.0
        %335 = vmatpush1.msra.mxu0 0.0
        %336 = vmatprep.subr.mxu0 0.0
        %337 = vmatpush1.msra.mxu0 0.0
        %338 = vmatprep.subr.mxu0 0.0
        %339 = vmatpush1.msra.mxu0 0.0
        %340 = vmatprep.subr.mxu0 0.0
        %341 = vmatpush1.msra.mxu0 0.0
        %342 = vmatprep.subr.mxu0 0.0
        %343 = vmatpush1.msra.mxu0 0.0
        %344 = vmatprep.subr.mxu0 0.0
        %345 = vmatpush1.msra.mxu0 0.0
        %346 = vmatprep.subr.mxu0 0.0
        %347 = vmatpush1.msra.mxu0 0.0
        %348 = vmatprep.subr.mxu0 0.0
        %349 = vmatpush1.msra.mxu0 0.0
        %350 = vmatprep.subr.mxu0 0.0
        %351 = vmatpush1.msra.mxu0 0.0
        %352 = vmatprep.subr.mxu0 0.0
        %353 = vmatpush1.msra.mxu0 0.0
        %354 = vmatprep.subr.mxu0 0.0
        %355 = vmatpush1.msra.mxu0 0.0
        %356 = vmatprep.subr.mxu0 0.0
        %357 = vmatpush1.msra.mxu0 0.0
        %358 = vmatprep.subr.mxu0 0.0
        %359 = vmatpush1.msra.mxu0 0.0
        %360 = vmatprep.subr.mxu0 0.0
        %361 = vmatpush1.msra.mxu0 0.0
        %362 = vmatprep.subr.mxu0 0.0
        %363 = vmatpush1.msra.mxu0 0.0
        %364 = vmatprep.subr.mxu0 0.0
        %365 = vmatpush1.msra.mxu0 0.0
        %366 = vmatprep.subr.mxu0 0.0
        %367 = vmatpush1.msra.mxu0 0.0
        %368 = vmatprep.subr.mxu0 0.0
        %369 = vmatpush1.msra.mxu0 0.0
        %370 = vmatprep.subr.mxu0 0.0
        %371 = vmatpush1.msra.mxu0 0.0
        %372 = vmatprep.subr.mxu0 0.0
        %373 = vmatpush1.msra.mxu0 0.0
        %374 = vmatprep.subr.mxu0 0.0
        %375 = vmatpush1.msra.mxu0 0.0
        %376 = vmatprep.subr.mxu0 0.0
        %377 = vmatpush1.msra.mxu0 0.0
        %378 = vmatprep.mubr.f32.mxu0 0.0
        %379 = vmatmul.mubr.f32.gmra.mrb[0].mxu0 %v302
        %v380 = vpop.f32.mrb[0].mxu0
        %v381 = vadd.f32 %v293, %v380
        %v382 = vpop.f32.mrb[0].mxu0
        %v383 = vadd.f32 %v293, %v382
        %384 = vmatprep.mubr.f32.mxu0 0.0
        %385 = vmatmul.mubr.f32.gmra.mrb[0].mxu0 %v305
        %v386 = vpop.f32.mrb[0].mxu0
        %v387 = vadd.f32 %v298, %v386
        %v388 = vpop.f32.mrb[0].mxu0
        %v389 = vadd.f32 %v298, %v388
        %390 = vdwg.mxu0
        %v391 = vmax.f32 %v381, 0.0
        %v392 = vmax.f32 %v383, 0.0
        %v393 = vmax.f32 %v387, 0.0
        %v394 = vmax.f32 %v389, 0.0
        %395 = vst [vmem:[#allocation2] sm:$0xff] %v391
        %vm396 = vcmask 556032
        %397 = vst.msk [vmem:[#allocation2 + $0x8] sm:$0xff] %vm396, %v392
        %398 = vst [vmem:[#allocation2 + $0x10] sm:$0xff] %v393
        %399 = vst.msk [vmem:[#allocation2 + $0x18] sm:$0xff] %vm396, %v394
        %v400 = vld [vmem:[%s4] sm:$0x1]
        %v401 = vld [vmem:[#allocation2] ss:$8 sm:$0x3]
        %v402 = vld [vmem:[%s3] sm:$0xff]
        %v403 = vld [vmem:[%s3 + $0x8] sm:$0xff]
        %v404 = vld [vmem:[%s3 + $0x10] sm:$0xff]
        %v405 = vld [vmem:[%s3 + $0x18] sm:$0xff]
        %v406 = vld [vmem:[%s3 + $0x20] sm:$0xff]
        %v407 = vld [vmem:[%s3 + $0x28] sm:$0xff]
        %v408 = vld [vmem:[%s3 + $0x30] sm:$0xff]
        %v409 = vld [vmem:[%s3 + $0x38] sm:$0xff]
        %v410 = vld [vmem:[%s3 + $0x40] sm:$0xff]
        %v411 = vld [vmem:[%s3 + $0x48] sm:$0xff]
        %v412 = vld [vmem:[%s3 + $0x50] sm:$0xff]
        %v413 = vld [vmem:[%s3 + $0x58] sm:$0xff]
        %v414 = vld [vmem:[%s3 + $0x60] sm:$0xff]
        %v415 = vld [vmem:[%s3 + $0x68] sm:$0xff]
        %v416 = vld [vmem:[%s3 + $0x70] sm:$0xff]
        %v417 = vld [vmem:[%s3 + $0x78] sm:$0xff]
        %v418 = vld [vmem:[%s3 + $0x80] sm:$0xff]
        %v419 = vld [vmem:[%s3 + $0x88] sm:$0xff]
        %v420 = vld [vmem:[%s3 + $0x90] sm:$0xff]
        %v421 = vld [vmem:[%s3 + $0x98] sm:$0xff]
        %v422 = vld [vmem:[%s3 + $0xa0] sm:$0xff]
        %v423 = vld [vmem:[%s3 + $0xa8] sm:$0xff]
        %v424 = vld [vmem:[%s3 + $0xb0] sm:$0xff]
        %v425 = vld [vmem:[%s3 + $0xb8] sm:$0xff]
        %v426 = vld [vmem:[%s3 + $0xc0] sm:$0xf]
        %v428 = vlaneseq
        %v429 = vshrl.u32 %v428, 7
        %v430 = vsub.s32 0, %v429
        %v431 = vrot.slane %v401, %v430
        %v432 = vlaneseq
        %v433 = vshrl.u32 %v432, 7
        %v434 = vsub.s32 1, %v433
        %v435 = vrot.slane %v401, %v434
        %v437 = vsel %vm396, %v435, 0
        %v440 = vsel %vm307, %v426, 0
        %442 = vmatprep.subr.mxu0 0.0
        %443 = vmatpush1.msra.mxu0 %v402
        %444 = vmatprep.subr.mxu0 0.0
        %445 = vmatpush1.msra.mxu0 %v403
        %446 = vmatprep.subr.mxu0 0.0
        %447 = vmatpush1.msra.mxu0 %v404
        %448 = vmatprep.subr.mxu0 0.0
        %449 = vmatpush1.msra.mxu0 %v405
        %450 = vmatprep.subr.mxu0 0.0
        %451 = vmatpush1.msra.mxu0 %v406
        %452 = vmatprep.subr.mxu0 0.0
        %453 = vmatpush1.msra.mxu0 %v407
        %454 = vmatprep.subr.mxu0 0.0
        %455 = vmatpush1.msra.mxu0 %v408
        %456 = vmatprep.subr.mxu0 0.0
        %457 = vmatpush1.msra.mxu0 %v409
        %458 = vmatprep.subr.mxu0 0.0
        %459 = vmatpush1.msra.mxu0 %v410
        %460 = vmatprep.subr.mxu0 0.0
        %461 = vmatpush1.msra.mxu0 %v411
        %462 = vmatprep.subr.mxu0 0.0
        %463 = vmatpush1.msra.mxu0 %v412
        %464 = vmatprep.subr.mxu0 0.0
        %465 = vmatpush1.msra.mxu0 %v413
        %466 = vmatprep.subr.mxu0 0.0
        %467 = vmatpush1.msra.mxu0 %v414
        %468 = vmatprep.subr.mxu0 0.0
        %469 = vmatpush1.msra.mxu0 %v415
        %470 = vmatprep.subr.mxu0 0.0
        %471 = vmatpush1.msra.mxu0 %v416
        %472 = vmatprep.subr.mxu0 0.0
        %473 = vmatpush1.msra.mxu0 %v417
        %474 = vmatprep.subr.mxu0 0.0
        %475 = vmatpush1.msra.mxu0 %v418
        %476 = vmatprep.subr.mxu0 0.0
        %477 = vmatpush1.msra.mxu0 %v419
        %478 = vmatprep.subr.mxu0 0.0
        %479 = vmatpush1.msra.mxu0 %v420
        %480 = vmatprep.subr.mxu0 0.0
        %481 = vmatpush1.msra.mxu0 %v421
        %482 = vmatprep.subr.mxu0 0.0
        %483 = vmatpush1.msra.mxu0 %v422
        %484 = vmatprep.subr.mxu0 0.0
        %485 = vmatpush1.msra.mxu0 %v423
        %486 = vmatprep.subr.mxu0 0.0
        %487 = vmatpush1.msra.mxu0 %v424
        %488 = vmatprep.subr.mxu0 0.0
        %489 = vmatpush1.msra.mxu0 %v425
        %490 = vmatprep.subr.mxu0 0.0
        %491 = vmatpush1.msra.mxu0 %v440
        %492 = vmatprep.subr.mxu0 0.0
        %493 = vmatpush1.msra.mxu0 0.0
        %494 = vmatprep.subr.mxu0 0.0
        %495 = vmatpush1.msra.mxu0 0.0
        %496 = vmatprep.subr.mxu0 0.0
        %497 = vmatpush1.msra.mxu0 0.0
        %498 = vmatprep.subr.mxu0 0.0
        %499 = vmatpush1.msra.mxu0 0.0
        %500 = vmatprep.subr.mxu0 0.0
        %501 = vmatpush1.msra.mxu0 0.0
        %502 = vmatprep.subr.mxu0 0.0
        %503 = vmatpush1.msra.mxu0 0.0
        %504 = vmatprep.subr.mxu0 0.0
        %505 = vmatpush1.msra.mxu0 0.0
        %506 = vmatprep.mubr.f32.mxu0 %v437
        %507 = vmatmul.mubr.f32.gmra.mrb[0].mxu0 %v431
        %v508 = vpop.f32.mrb[0].mxu0
        %v509 = vadd.f32 0.0, %v508
        %v510 = vpop.f32.mrb[0].mxu0
        %511 = vdwg.mxu0
        %v512 = vadd.f32 %v400, %v509
        %s513 = scalar_lea.vmem [#allocation2], 1
        %v514 = vld [vmem:[%s513] ss:$8 sm:$0x3]
        %v515 = vld [vmem:[%s3 + $0xc4] sm:$0xff]
        %v516 = vld [vmem:[%s3 + $0xcc] sm:$0xff]
        %v517 = vld [vmem:[%s3 + $0xd4] sm:$0xff]
        %v518 = vld [vmem:[%s3 + $0xdc] sm:$0xff]
        %v519 = vld [vmem:[%s3 + $0xe4] sm:$0xff]
        %v520 = vld [vmem:[%s3 + $0xec] sm:$0xff]
        %v521 = vld [vmem:[%s3 + $0xf4] sm:$0xff]
        %v522 = vld [vmem:[%s3 + $0xfc] sm:$0xff]
        %v523 = vld [vmem:[%s3 + $0x104] sm:$0xff]
        %v524 = vld [vmem:[%s3 + $0x10c] sm:$0xff]
        %v525 = vld [vmem:[%s3 + $0x114] sm:$0xff]
        %v526 = vld [vmem:[%s3 + $0x11c] sm:$0xff]
        %v527 = vld [vmem:[%s3 + $0x124] sm:$0xff]
        %v528 = vld [vmem:[%s3 + $0x12c] sm:$0xff]
        %v529 = vld [vmem:[%s3 + $0x134] sm:$0xff]
        %v530 = vld [vmem:[%s3 + $0x13c] sm:$0xff]
        %v531 = vld [vmem:[%s3 + $0x144] sm:$0xff]
        %v532 = vld [vmem:[%s3 + $0x14c] sm:$0xff]
        %v533 = vld [vmem:[%s3 + $0x154] sm:$0xff]
        %v534 = vld [vmem:[%s3 + $0x15c] sm:$0xff]
        %v535 = vld [vmem:[%s3 + $0x164] sm:$0xff]
        %v536 = vld [vmem:[%s3 + $0x16c] sm:$0xff]
        %v537 = vld [vmem:[%s3 + $0x174] sm:$0xff]
        %v538 = vld [vmem:[%s3 + $0x17c] sm:$0xff]
        %v539 = vld [vmem:[%s3 + $0x184] sm:$0xf]
        %v541 = vlaneseq
        %v542 = vshrl.u32 %v541, 7
        %v543 = vsub.s32 0, %v542
        %v544 = vrot.slane %v514, %v543
        %v545 = vlaneseq
        %v546 = vshrl.u32 %v545, 7
        %v547 = vsub.s32 1, %v546
        %v548 = vrot.slane %v514, %v547
        %v550 = vsel %vm396, %v548, 0
        %v553 = vsel %vm307, %v539, 0
        %555 = vmatprep.subr.mxu0 0.0
        %556 = vmatpush1.msra.mxu0 %v515
        %557 = vmatprep.subr.mxu0 0.0
        %558 = vmatpush1.msra.mxu0 %v516
        %559 = vmatprep.subr.mxu0 0.0
        %560 = vmatpush1.msra.mxu0 %v517
        %561 = vmatprep.subr.mxu0 0.0
        %562 = vmatpush1.msra.mxu0 %v518
        %563 = vmatprep.subr.mxu0 0.0
        %564 = vmatpush1.msra.mxu0 %v519
        %565 = vmatprep.subr.mxu0 0.0
        %566 = vmatpush1.msra.mxu0 %v520
        %567 = vmatprep.subr.mxu0 0.0
        %568 = vmatpush1.msra.mxu0 %v521
        %569 = vmatprep.subr.mxu0 0.0
        %570 = vmatpush1.msra.mxu0 %v522
        %571 = vmatprep.subr.mxu0 0.0
        %572 = vmatpush1.msra.mxu0 %v523
        %573 = vmatprep.subr.mxu0 0.0
        %574 = vmatpush1.msra.mxu0 %v524
        %575 = vmatprep.subr.mxu0 0.0
        %576 = vmatpush1.msra.mxu0 %v525
        %577 = vmatprep.subr.mxu0 0.0
        %578 = vmatpush1.msra.mxu0 %v526
        %579 = vmatprep.subr.mxu0 0.0
        %580 = vmatpush1.msra.mxu0 %v527
        %581 = vmatprep.subr.mxu0 0.0
        %582 = vmatpush1.msra.mxu0 %v528
        %583 = vmatprep.subr.mxu0 0.0
        %584 = vmatpush1.msra.mxu0 %v529
        %585 = vmatprep.subr.mxu0 0.0
        %586 = vmatpush1.msra.mxu0 %v530
        %587 = vmatprep.subr.mxu0 0.0
        %588 = vmatpush1.msra.mxu0 %v531
        %589 = vmatprep.subr.mxu0 0.0
        %590 = vmatpush1.msra.mxu0 %v532
        %591 = vmatprep.subr.mxu0 0.0
        %592 = vmatpush1.msra.mxu0 %v533
        %593 = vmatprep.subr.mxu0 0.0
        %594 = vmatpush1.msra.mxu0 %v534
        %595 = vmatprep.subr.mxu0 0.0
        %596 = vmatpush1.msra.mxu0 %v535
        %597 = vmatprep.subr.mxu0 0.0
        %598 = vmatpush1.msra.mxu0 %v536
        %599 = vmatprep.subr.mxu0 0.0
        %600 = vmatpush1.msra.mxu0 %v537
        %601 = vmatprep.subr.mxu0 0.0
        %602 = vmatpush1.msra.mxu0 %v538
        %603 = vmatprep.subr.mxu0 0.0
        %604 = vmatpush1.msra.mxu0 %v553
        %605 = vmatprep.subr.mxu0 0.0
        %606 = vmatpush1.msra.mxu0 0.0
        %607 = vmatprep.subr.mxu0 0.0
        %608 = vmatpush1.msra.mxu0 0.0
        %609 = vmatprep.subr.mxu0 0.0
        %610 = vmatpush1.msra.mxu0 0.0
        %611 = vmatprep.subr.mxu0 0.0
        %612 = vmatpush1.msra.mxu0 0.0
        %613 = vmatprep.subr.mxu0 0.0
        %614 = vmatpush1.msra.mxu0 0.0
        %615 = vmatprep.subr.mxu0 0.0
        %616 = vmatpush1.msra.mxu0 0.0
        %617 = vmatprep.subr.mxu0 0.0
        %618 = vmatpush1.msra.mxu0 0.0
        %619 = vmatprep.mubr.f32.mxu0 %v550
        %620 = vmatmul.mubr.f32.gmra.mrb[0].mxu0 %v544
        %v621 = vpop.f32.mrb[0].mxu0
        %v622 = vadd.f32 0.0, %v621
        %v623 = vpop.f32.mrb[0].mxu0
        %624 = vdwg.mxu0
        %v625 = vadd.f32 %v512, %v622
        %s626 = scalar_lea.vmem [#allocation2], 2
        %v627 = vld [vmem:[%s626] ss:$8 sm:$0x3]
        %v628 = vld [vmem:[%s3 + $0x188] sm:$0xff]
        %v629 = vld [vmem:[%s3 + $0x190] sm:$0xff]
        %v630 = vld [vmem:[%s3 + $0x198] sm:$0xff]
        %v631 = vld [vmem:[%s3 + $0x1a0] sm:$0xff]
        %v632 = vld [vmem:[%s3 + $0x1a8] sm:$0xff]
        %v633 = vld [vmem:[%s3 + $0x1b0] sm:$0xff]
        %v634 = vld [vmem:[%s3 + $0x1b8] sm:$0xff]
        %v635 = vld [vmem:[%s3 + $0x1c0] sm:$0xff]
        %v636 = vld [vmem:[%s3 + $0x1c8] sm:$0xff]
        %v637 = vld [vmem:[%s3 + $0x1d0] sm:$0xff]
        %v638 = vld [vmem:[%s3 + $0x1d8] sm:$0xff]
        %v639 = vld [vmem:[%s3 + $0x1e0] sm:$0xff]
        %v640 = vld [vmem:[%s3 + $0x1e8] sm:$0xff]
        %v641 = vld [vmem:[%s3 + $0x1f0] sm:$0xff]
        %v642 = vld [vmem:[%s3 + $0x1f8] sm:$0xff]
        %v643 = vld [vmem:[%s3 + $0x200] sm:$0xff]
        %v644 = vld [vmem:[%s3 + $0x208] sm:$0xff]
        %v645 = vld [vmem:[%s3 + $0x210] sm:$0xff]
        %v646 = vld [vmem:[%s3 + $0x218] sm:$0xff]
        %v647 = vld [vmem:[%s3 + $0x220] sm:$0xff]
        %v648 = vld [vmem:[%s3 + $0x228] sm:$0xff]
        %v649 = vld [vmem:[%s3 + $0x230] sm:$0xff]
        %v650 = vld [vmem:[%s3 + $0x238] sm:$0xff]
        %v651 = vld [vmem:[%s3 + $0x240] sm:$0xff]
        %v652 = vld [vmem:[%s3 + $0x248] sm:$0xf]
        %v654 = vlaneseq
        %v655 = vshrl.u32 %v654, 7
        %v656 = vsub.s32 0, %v655
        %v657 = vrot.slane %v627, %v656
        %v658 = vlaneseq
        %v659 = vshrl.u32 %v658, 7
        %v660 = vsub.s32 1, %v659
        %v661 = vrot.slane %v627, %v660
        %v663 = vsel %vm396, %v661, 0
        %v666 = vsel %vm307, %v652, 0
        %668 = vmatprep.subr.mxu0 0.0
        %669 = vmatpush1.msra.mxu0 %v628
        %670 = vmatprep.subr.mxu0 0.0
        %671 = vmatpush1.msra.mxu0 %v629
        %672 = vmatprep.subr.mxu0 0.0
        %673 = vmatpush1.msra.mxu0 %v630
        %674 = vmatprep.subr.mxu0 0.0
        %675 = vmatpush1.msra.mxu0 %v631
        %676 = vmatprep.subr.mxu0 0.0
        %677 = vmatpush1.msra.mxu0 %v632
        %678 = vmatprep.subr.mxu0 0.0
        %679 = vmatpush1.msra.mxu0 %v633
        %680 = vmatprep.subr.mxu0 0.0
        %681 = vmatpush1.msra.mxu0 %v634
        %682 = vmatprep.subr.mxu0 0.0
        %683 = vmatpush1.msra.mxu0 %v635
        %684 = vmatprep.subr.mxu0 0.0
        %685 = vmatpush1.msra.mxu0 %v636
        %686 = vmatprep.subr.mxu0 0.0
        %687 = vmatpush1.msra.mxu0 %v637
        %688 = vmatprep.subr.mxu0 0.0
        %689 = vmatpush1.msra.mxu0 %v638
        %690 = vmatprep.subr.mxu0 0.0
        %691 = vmatpush1.msra.mxu0 %v639
        %692 = vmatprep.subr.mxu0 0.0
        %693 = vmatpush1.msra.mxu0 %v640
        %694 = vmatprep.subr.mxu0 0.0
        %695 = vmatpush1.msra.mxu0 %v641
        %696 = vmatprep.subr.mxu0 0.0
        %697 = vmatpush1.msra.mxu0 %v642
        %698 = vmatprep.subr.mxu0 0.0
        %699 = vmatpush1.msra.mxu0 %v643
        %700 = vmatprep.subr.mxu0 0.0
        %701 = vmatpush1.msra.mxu0 %v644
        %702 = vmatprep.subr.mxu0 0.0
        %703 = vmatpush1.msra.mxu0 %v645
        %704 = vmatprep.subr.mxu0 0.0
        %705 = vmatpush1.msra.mxu0 %v646
        %706 = vmatprep.subr.mxu0 0.0
        %707 = vmatpush1.msra.mxu0 %v647
        %708 = vmatprep.subr.mxu0 0.0
        %709 = vmatpush1.msra.mxu0 %v648
        %710 = vmatprep.subr.mxu0 0.0
        %711 = vmatpush1.msra.mxu0 %v649
        %712 = vmatprep.subr.mxu0 0.0
        %713 = vmatpush1.msra.mxu0 %v650
        %714 = vmatprep.subr.mxu0 0.0
        %715 = vmatpush1.msra.mxu0 %v651
        %716 = vmatprep.subr.mxu0 0.0
        %717 = vmatpush1.msra.mxu0 %v666
        %718 = vmatprep.subr.mxu0 0.0
        %719 = vmatpush1.msra.mxu0 0.0
        %720 = vmatprep.subr.mxu0 0.0
        %721 = vmatpush1.msra.mxu0 0.0
        %722 = vmatprep.subr.mxu0 0.0
        %723 = vmatpush1.msra.mxu0 0.0
        %724 = vmatprep.subr.mxu0 0.0
        %725 = vmatpush1.msra.mxu0 0.0
        %726 = vmatprep.subr.mxu0 0.0
        %727 = vmatpush1.msra.mxu0 0.0
        %728 = vmatprep.subr.mxu0 0.0
        %729 = vmatpush1.msra.mxu0 0.0
        %730 = vmatprep.subr.mxu0 0.0
        %731 = vmatpush1.msra.mxu0 0.0
        %732 = vmatprep.mubr.f32.mxu0 %v663
        %733 = vmatmul.mubr.f32.gmra.mrb[0].mxu0 %v657
        %v734 = vpop.f32.mrb[0].mxu0
        %v735 = vadd.f32 0.0, %v734
        %v736 = vpop.f32.mrb[0].mxu0
        %737 = vdwg.mxu0
        %v738 = vadd.f32 %v625, %v735
        %s739 = scalar_lea.vmem [#allocation2], 3
        %v740 = vld [vmem:[%s739] ss:$8 sm:$0x3]
        %v741 = vld [vmem:[%s3 + $0x24c] sm:$0xff]
        %v742 = vld [vmem:[%s3 + $0x254] sm:$0xff]
        %v743 = vld [vmem:[%s3 + $0x25c] sm:$0xff]
        %v744 = vld [vmem:[%s3 + $0x264] sm:$0xff]
        %v745 = vld [vmem:[%s3 + $0x26c] sm:$0xff]
        %v746 = vld [vmem:[%s3 + $0x274] sm:$0xff]
        %v747 = vld [vmem:[%s3 + $0x27c] sm:$0xff]
        %v748 = vld [vmem:[%s3 + $0x284] sm:$0xff]
        %v749 = vld [vmem:[%s3 + $0x28c] sm:$0xff]
        %v750 = vld [vmem:[%s3 + $0x294] sm:$0xff]
        %v751 = vld [vmem:[%s3 + $0x29c] sm:$0xff]
        %v752 = vld [vmem:[%s3 + $0x2a4] sm:$0xff]
        %v753 = vld [vmem:[%s3 + $0x2ac] sm:$0xff]
        %v754 = vld [vmem:[%s3 + $0x2b4] sm:$0xff]
        %v755 = vld [vmem:[%s3 + $0x2bc] sm:$0xff]
        %v756 = vld [vmem:[%s3 + $0x2c4] sm:$0xff]
        %v757 = vld [vmem:[%s3 + $0x2cc] sm:$0xff]
        %v758 = vld [vmem:[%s3 + $0x2d4] sm:$0xff]
        %v759 = vld [vmem:[%s3 + $0x2dc] sm:$0xff]
        %v760 = vld [vmem:[%s3 + $0x2e4] sm:$0xff]
        %v761 = vld [vmem:[%s3 + $0x2ec] sm:$0xff]
        %v762 = vld [vmem:[%s3 + $0x2f4] sm:$0xff]
        %v763 = vld [vmem:[%s3 + $0x2fc] sm:$0xff]
        %v764 = vld [vmem:[%s3 + $0x304] sm:$0xff]
        %v765 = vld [vmem:[%s3 + $0x30c] sm:$0xf]
        %v767 = vlaneseq
        %v768 = vshrl.u32 %v767, 7
        %v769 = vsub.s32 0, %v768
        %v770 = vrot.slane %v740, %v769
        %v771 = vlaneseq
        %v772 = vshrl.u32 %v771, 7
        %v773 = vsub.s32 1, %v772
        %v774 = vrot.slane %v740, %v773
        %v776 = vsel %vm396, %v774, 0
        %v779 = vsel %vm307, %v765, 0
        %781 = vmatprep.subr.mxu0 0.0
        %782 = vmatpush1.msra.mxu0 %v741
        %783 = vmatprep.subr.mxu0 0.0
        %784 = vmatpush1.msra.mxu0 %v742
        %785 = vmatprep.subr.mxu0 0.0
        %786 = vmatpush1.msra.mxu0 %v743
        %787 = vmatprep.subr.mxu0 0.0
        %788 = vmatpush1.msra.mxu0 %v744
        %789 = vmatprep.subr.mxu0 0.0
        %790 = vmatpush1.msra.mxu0 %v745
        %791 = vmatprep.subr.mxu0 0.0
        %792 = vmatpush1.msra.mxu0 %v746
        %793 = vmatprep.subr.mxu0 0.0
        %794 = vmatpush1.msra.mxu0 %v747
        %795 = vmatprep.subr.mxu0 0.0
        %796 = vmatpush1.msra.mxu0 %v748
        %797 = vmatprep.subr.mxu0 0.0
        %798 = vmatpush1.msra.mxu0 %v749
        %799 = vmatprep.subr.mxu0 0.0
        %800 = vmatpush1.msra.mxu0 %v750
        %801 = vmatprep.subr.mxu0 0.0
        %802 = vmatpush1.msra.mxu0 %v751
        %803 = vmatprep.subr.mxu0 0.0
        %804 = vmatpush1.msra.mxu0 %v752
        %805 = vmatprep.subr.mxu0 0.0
        %806 = vmatpush1.msra.mxu0 %v753
        %807 = vmatprep.subr.mxu0 0.0
        %808 = vmatpush1.msra.mxu0 %v754
        %809 = vmatprep.subr.mxu0 0.0
        %810 = vmatpush1.msra.mxu0 %v755
        %811 = vmatprep.subr.mxu0 0.0
        %812 = vmatpush1.msra.mxu0 %v756
        %813 = vmatprep.subr.mxu0 0.0
        %814 = vmatpush1.msra.mxu0 %v757
        %815 = vmatprep.subr.mxu0 0.0
        %816 = vmatpush1.msra.mxu0 %v758
        %817 = vmatprep.subr.mxu0 0.0
        %818 = vmatpush1.msra.mxu0 %v759
        %819 = vmatprep.subr.mxu0 0.0
        %820 = vmatpush1.msra.mxu0 %v760
        %821 = vmatprep.subr.mxu0 0.0
        %822 = vmatpush1.msra.mxu0 %v761
        %823 = vmatprep.subr.mxu0 0.0
        %824 = vmatpush1.msra.mxu0 %v762
        %825 = vmatprep.subr.mxu0 0.0
        %826 = vmatpush1.msra.mxu0 %v763
        %827 = vmatprep.subr.mxu0 0.0
        %828 = vmatpush1.msra.mxu0 %v764
        %829 = vmatprep.subr.mxu0 0.0
        %830 = vmatpush1.msra.mxu0 %v779
        %831 = vmatprep.subr.mxu0 0.0
        %832 = vmatpush1.msra.mxu0 0.0
        %833 = vmatprep.subr.mxu0 0.0
        %834 = vmatpush1.msra.mxu0 0.0
        %835 = vmatprep.subr.mxu0 0.0
        %836 = vmatpush1.msra.mxu0 0.0
        %837 = vmatprep.subr.mxu0 0.0
        %838 = vmatpush1.msra.mxu0 0.0
        %839 = vmatprep.subr.mxu0 0.0
        %840 = vmatpush1.msra.mxu0 0.0
        %841 = vmatprep.subr.mxu0 0.0
        %842 = vmatpush1.msra.mxu0 0.0
        %843 = vmatprep.subr.mxu0 0.0
        %844 = vmatpush1.msra.mxu0 0.0
        %845 = vmatprep.mubr.f32.mxu0 %v776
        %846 = vmatmul.mubr.f32.gmra.mrb[0].mxu0 %v770
        %v847 = vpop.f32.mrb[0].mxu0
        %v848 = vadd.f32 0.0, %v847
        %v849 = vpop.f32.mrb[0].mxu0
        %850 = vdwg.mxu0
        %v851 = vadd.f32 %v738, %v848
        %s852 = scalar_lea.vmem [#allocation2], 4
        %v853 = vld [vmem:[%s852] ss:$8 sm:$0x3]
        %v854 = vld [vmem:[%s3 + $0x310] sm:$0xff]
        %v855 = vld [vmem:[%s3 + $0x318] sm:$0xff]
        %v856 = vld [vmem:[%s3 + $0x320] sm:$0xff]
        %v857 = vld [vmem:[%s3 + $0x328] sm:$0xff]
        %v858 = vld [vmem:[%s3 + $0x330] sm:$0xff]
        %v859 = vld [vmem:[%s3 + $0x338] sm:$0xff]
        %v860 = vld [vmem:[%s3 + $0x340] sm:$0xff]
        %v861 = vld [vmem:[%s3 + $0x348] sm:$0xff]
        %v862 = vld [vmem:[%s3 + $0x350] sm:$0xff]
        %v863 = vld [vmem:[%s3 + $0x358] sm:$0xff]
        %v864 = vld [vmem:[%s3 + $0x360] sm:$0xff]
        %v865 = vld [vmem:[%s3 + $0x368] sm:$0xff]
        %v866 = vld [vmem:[%s3 + $0x370] sm:$0xff]
        %v867 = vld [vmem:[%s3 + $0x378] sm:$0xff]
        %v868 = vld [vmem:[%s3 + $0x380] sm:$0xff]
        %v869 = vld [vmem:[%s3 + $0x388] sm:$0xff]
        %v870 = vld [vmem:[%s3 + $0x390] sm:$0xff]
        %v871 = vld [vmem:[%s3 + $0x398] sm:$0xff]
        %v872 = vld [vmem:[%s3 + $0x3a0] sm:$0xff]
        %v873 = vld [vmem:[%s3 + $0x3a8] sm:$0xff]
        %v874 = vld [vmem:[%s3 + $0x3b0] sm:$0xff]
        %v875 = vld [vmem:[%s3 + $0x3b8] sm:$0xff]
        %v876 = vld [vmem:[%s3 + $0x3c0] sm:$0xff]
        %v877 = vld [vmem:[%s3 + $0x3c8] sm:$0xff]
        %v878 = vld [vmem:[%s3 + $0x3d0] sm:$0xf]
        %v880 = vlaneseq
        %v881 = vshrl.u32 %v880, 7
        %v882 = vsub.s32 0, %v881
        %v883 = vrot.slane %v853, %v882
        %v884 = vlaneseq
        %v885 = vshrl.u32 %v884, 7
        %v886 = vsub.s32 1, %v885
        %v887 = vrot.slane %v853, %v886
        %v889 = vsel %vm396, %v887, 0
        %v892 = vsel %vm307, %v878, 0
        %894 = vmatprep.subr.mxu0 0.0
        %895 = vmatpush1.msra.mxu0 %v854
        %896 = vmatprep.subr.mxu0 0.0
        %897 = vmatpush1.msra.mxu0 %v855
        %898 = vmatprep.subr.mxu0 0.0
        %899 = vmatpush1.msra.mxu0 %v856
        %900 = vmatprep.subr.mxu0 0.0
        %901 = vmatpush1.msra.mxu0 %v857
        %902 = vmatprep.subr.mxu0 0.0
        %903 = vmatpush1.msra.mxu0 %v858
        %904 = vmatprep.subr.mxu0 0.0
        %905 = vmatpush1.msra.mxu0 %v859
        %906 = vmatprep.subr.mxu0 0.0
        %907 = vmatpush1.msra.mxu0 %v860
        %908 = vmatprep.subr.mxu0 0.0
        %909 = vmatpush1.msra.mxu0 %v861
        %910 = vmatprep.subr.mxu0 0.0
        %911 = vmatpush1.msra.mxu0 %v862
        %912 = vmatprep.subr.mxu0 0.0
        %913 = vmatpush1.msra.mxu0 %v863
        %914 = vmatprep.subr.mxu0 0.0
        %915 = vmatpush1.msra.mxu0 %v864
        %916 = vmatprep.subr.mxu0 0.0
        %917 = vmatpush1.msra.mxu0 %v865
        %918 = vmatprep.subr.mxu0 0.0
        %919 = vmatpush1.msra.mxu0 %v866
        %920 = vmatprep.subr.mxu0 0.0
        %921 = vmatpush1.msra.mxu0 %v867
        %922 = vmatprep.subr.mxu0 0.0
        %923 = vmatpush1.msra.mxu0 %v868
        %924 = vmatprep.subr.mxu0 0.0
        %925 = vmatpush1.msra.mxu0 %v869
        %926 = vmatprep.subr.mxu0 0.0
        %927 = vmatpush1.msra.mxu0 %v870
        %928 = vmatprep.subr.mxu0 0.0
        %929 = vmatpush1.msra.mxu0 %v871
        %930 = vmatprep.subr.mxu0 0.0
        %931 = vmatpush1.msra.mxu0 %v872
        %932 = vmatprep.subr.mxu0 0.0
        %933 = vmatpush1.msra.mxu0 %v873
        %934 = vmatprep.subr.mxu0 0.0
        %935 = vmatpush1.msra.mxu0 %v874
        %936 = vmatprep.subr.mxu0 0.0
        %937 = vmatpush1.msra.mxu0 %v875
        %938 = vmatprep.subr.mxu0 0.0
        %939 = vmatpush1.msra.mxu0 %v876
        %940 = vmatprep.subr.mxu0 0.0
        %941 = vmatpush1.msra.mxu0 %v877
        %942 = vmatprep.subr.mxu0 0.0
        %943 = vmatpush1.msra.mxu0 %v892
        %944 = vmatprep.subr.mxu0 0.0
        %945 = vmatpush1.msra.mxu0 0.0
        %946 = vmatprep.subr.mxu0 0.0
        %947 = vmatpush1.msra.mxu0 0.0
        %948 = vmatprep.subr.mxu0 0.0
        %949 = vmatpush1.msra.mxu0 0.0
        %950 = vmatprep.subr.mxu0 0.0
        %951 = vmatpush1.msra.mxu0 0.0
        %952 = vmatprep.subr.mxu0 0.0
        %953 = vmatpush1.msra.mxu0 0.0
        %954 = vmatprep.subr.mxu0 0.0
        %955 = vmatpush1.msra.mxu0 0.0
        %956 = vmatprep.subr.mxu0 0.0
        %957 = vmatpush1.msra.mxu0 0.0
        %958 = vmatprep.mubr.f32.mxu0 %v889
        %959 = vmatmul.mubr.f32.gmra.mrb[0].mxu0 %v883
        %v960 = vpop.f32.mrb[0].mxu0
        %v961 = vadd.f32 0.0, %v960
        %v962 = vpop.f32.mrb[0].mxu0
        %963 = vdwg.mxu0
        %v964 = vadd.f32 %v851, %v961
        %s965 = scalar_lea.vmem [#allocation2], 5
        %v966 = vld [vmem:[%s965] ss:$8 sm:$0x3]
        %v967 = vld [vmem:[%s3 + $0x3d4] sm:$0xff]
        %v968 = vld [vmem:[%s3 + $0x3dc] sm:$0xff]
        %v969 = vld [vmem:[%s3 + $0x3e4] sm:$0xff]
        %v970 = vld [vmem:[%s3 + $0x3ec] sm:$0xff]
        %v971 = vld [vmem:[%s3 + $0x3f4] sm:$0xff]
        %v972 = vld [vmem:[%s3 + $0x3fc] sm:$0xff]
        %v973 = vld [vmem:[%s3 + $0x404] sm:$0xff]
        %v974 = vld [vmem:[%s3 + $0x40c] sm:$0xff]
        %v975 = vld [vmem:[%s3 + $0x414] sm:$0xff]
        %v976 = vld [vmem:[%s3 + $0x41c] sm:$0xff]
        %v977 = vld [vmem:[%s3 + $0x424] sm:$0xff]
        %v978 = vld [vmem:[%s3 + $0x42c] sm:$0xff]
        %v979 = vld [vmem:[%s3 + $0x434] sm:$0xff]
        %v980 = vld [vmem:[%s3 + $0x43c] sm:$0xff]
        %v981 = vld [vmem:[%s3 + $0x444] sm:$0xff]
        %v982 = vld [vmem:[%s3 + $0x44c] sm:$0xff]
        %v983 = vld [vmem:[%s3 + $0x454] sm:$0xff]
        %v984 = vld [vmem:[%s3 + $0x45c] sm:$0xff]
        %v985 = vld [vmem:[%s3 + $0x464] sm:$0xff]
        %v986 = vld [vmem:[%s3 + $0x46c] sm:$0xff]
        %v987 = vld [vmem:[%s3 + $0x474] sm:$0xff]
        %v988 = vld [vmem:[%s3 + $0x47c] sm:$0xff]
        %v989 = vld [vmem:[%s3 + $0x484] sm:$0xff]
        %v990 = vld [vmem:[%s3 + $0x48c] sm:$0xff]
        %v991 = vld [vmem:[%s3 + $0x494] sm:$0xf]
        %v993 = vlaneseq
        %v994 = vshrl.u32 %v993, 7
        %v995 = vsub.s32 0, %v994
        %v996 = vrot.slane %v966, %v995
        %v997 = vlaneseq
        %v998 = vshrl.u32 %v997, 7
        %v999 = vsub.s32 1, %v998
        %v1000 = vrot.slane %v966, %v999
        %v1002 = vsel %vm396, %v1000, 0
        %v1005 = vsel %vm307, %v991, 0
        %1007 = vmatprep.subr.mxu0 0.0
        %1008 = vmatpush1.msra.mxu0 %v967
        %1009 = vmatprep.subr.mxu0 0.0
        %1010 = vmatpush1.msra.mxu0 %v968
        %1011 = vmatprep.subr.mxu0 0.0
        %1012 = vmatpush1.msra.mxu0 %v969
        %1013 = vmatprep.subr.mxu0 0.0
        %1014 = vmatpush1.msra.mxu0 %v970
        %1015 = vmatprep.subr.mxu0 0.0
        %1016 = vmatpush1.msra.mxu0 %v971
        %1017 = vmatprep.subr.mxu0 0.0
        %1018 = vmatpush1.msra.mxu0 %v972
        %1019 = vmatprep.subr.mxu0 0.0
        %1020 = vmatpush1.msra.mxu0 %v973
        %1021 = vmatprep.subr.mxu0 0.0
        %1022 = vmatpush1.msra.mxu0 %v974
        %1023 = vmatprep.subr.mxu0 0.0
        %1024 = vmatpush1.msra.mxu0 %v975
        %1025 = vmatprep.subr.mxu0 0.0
        %1026 = vmatpush1.msra.mxu0 %v976
        %1027 = vmatprep.subr.mxu0 0.0
        %1028 = vmatpush1.msra.mxu0 %v977
        %1029 = vmatprep.subr.mxu0 0.0
        %1030 = vmatpush1.msra.mxu0 %v978
        %1031 = vmatprep.subr.mxu0 0.0
        %1032 = vmatpush1.msra.mxu0 %v979
        %1033 = vmatprep.subr.mxu0 0.0
        %1034 = vmatpush1.msra.mxu0 %v980
        %1035 = vmatprep.subr.mxu0 0.0
        %1036 = vmatpush1.msra.mxu0 %v981
        %1037 = vmatprep.subr.mxu0 0.0
        %1038 = vmatpush1.msra.mxu0 %v982
        %1039 = vmatprep.subr.mxu0 0.0
        %1040 = vmatpush1.msra.mxu0 %v983
        %1041 = vmatprep.subr.mxu0 0.0
        %1042 = vmatpush1.msra.mxu0 %v984
        %1043 = vmatprep.subr.mxu0 0.0
        %1044 = vmatpush1.msra.mxu0 %v985
        %1045 = vmatprep.subr.mxu0 0.0
        %1046 = vmatpush1.msra.mxu0 %v986
        %1047 = vmatprep.subr.mxu0 0.0
        %1048 = vmatpush1.msra.mxu0 %v987
        %1049 = vmatprep.subr.mxu0 0.0
        %1050 = vmatpush1.msra.mxu0 %v988
        %1051 = vmatprep.subr.mxu0 0.0
        %1052 = vmatpush1.msra.mxu0 %v989
        %1053 = vmatprep.subr.mxu0 0.0
        %1054 = vmatpush1.msra.mxu0 %v990
        %1055 = vmatprep.subr.mxu0 0.0
        %1056 = vmatpush1.msra.mxu0 %v1005
        %1057 = vmatprep.subr.mxu0 0.0
        %1058 = vmatpush1.msra.mxu0 0.0
        %1059 = vmatprep.subr.mxu0 0.0
        %1060 = vmatpush1.msra.mxu0 0.0
        %1061 = vmatprep.subr.mxu0 0.0
        %1062 = vmatpush1.msra.mxu0 0.0
        %1063 = vmatprep.subr.mxu0 0.0
        %1064 = vmatpush1.msra.mxu0 0.0
        %1065 = vmatprep.subr.mxu0 0.0
        %1066 = vmatpush1.msra.mxu0 0.0
        %1067 = vmatprep.subr.mxu0 0.0
        %1068 = vmatpush1.msra.mxu0 0.0
        %1069 = vmatprep.subr.mxu0 0.0
        %1070 = vmatpush1.msra.mxu0 0.0
        %1071 = vmatprep.mubr.f32.mxu0 %v1002
        %1072 = vmatmul.mubr.f32.gmra.mrb[0].mxu0 %v996
        %v1073 = vpop.f32.mrb[0].mxu0
        %v1074 = vadd.f32 0.0, %v1073
        %v1075 = vpop.f32.mrb[0].mxu0
        %1076 = vdwg.mxu0
        %v1077 = vadd.f32 %v964, %v1074
        %s1078 = scalar_lea.vmem [#allocation2], 6
        %v1079 = vld [vmem:[%s1078] ss:$8 sm:$0x3]
        %v1080 = vld [vmem:[%s3 + $0x498] sm:$0xff]
        %v1081 = vld [vmem:[%s3 + $0x4a0] sm:$0xff]
        %v1082 = vld [vmem:[%s3 + $0x4a8] sm:$0xff]
        %v1083 = vld [vmem:[%s3 + $0x4b0] sm:$0xff]
        %v1084 = vld [vmem:[%s3 + $0x4b8] sm:$0xff]
        %v1085 = vld [vmem:[%s3 + $0x4c0] sm:$0xff]
        %v1086 = vld [vmem:[%s3 + $0x4c8] sm:$0xff]
        %v1087 = vld [vmem:[%s3 + $0x4d0] sm:$0xff]
        %v1088 = vld [vmem:[%s3 + $0x4d8] sm:$0xff]
        %v1089 = vld [vmem:[%s3 + $0x4e0] sm:$0xff]
        %v1090 = vld [vmem:[%s3 + $0x4e8] sm:$0xff]
        %v1091 = vld [vmem:[%s3 + $0x4f0] sm:$0xff]
        %v1092 = vld [vmem:[%s3 + $0x4f8] sm:$0xff]
        %v1093 = vld [vmem:[%s3 + $0x500] sm:$0xff]
        %v1094 = vld [vmem:[%s3 + $0x508] sm:$0xff]
        %v1095 = vld [vmem:[%s3 + $0x510] sm:$0xff]
        %v1096 = vld [vmem:[%s3 + $0x518] sm:$0xff]
        %v1097 = vld [vmem:[%s3 + $0x520] sm:$0xff]
        %v1098 = vld [vmem:[%s3 + $0x528] sm:$0xff]
        %v1099 = vld [vmem:[%s3 + $0x530] sm:$0xff]
        %v1100 = vld [vmem:[%s3 + $0x538] sm:$0xff]
        %v1101 = vld [vmem:[%s3 + $0x540] sm:$0xff]
        %v1102 = vld [vmem:[%s3 + $0x548] sm:$0xff]
        %v1103 = vld [vmem:[%s3 + $0x550] sm:$0xff]
        %v1104 = vld [vmem:[%s3 + $0x558] sm:$0xf]
        %v1106 = vlaneseq
        %v1107 = vshrl.u32 %v1106, 7
        %v1108 = vsub.s32 0, %v1107
        %v1109 = vrot.slane %v1079, %v1108
        %v1110 = vlaneseq
        %v1111 = vshrl.u32 %v1110, 7
        %v1112 = vsub.s32 1, %v1111
        %v1113 = vrot.slane %v1079, %v1112
        %v1115 = vsel %vm396, %v1113, 0
        %v1118 = vsel %vm307, %v1104, 0
        %1120 = vmatprep.subr.mxu0 0.0
        %1121 = vmatpush1.msra.mxu0 %v1080
        %1122 = vmatprep.subr.mxu0 0.0
        %1123 = vmatpush1.msra.mxu0 %v1081
        %1124 = vmatprep.subr.mxu0 0.0
        %1125 = vmatpush1.msra.mxu0 %v1082
        %1126 = vmatprep.subr.mxu0 0.0
        %1127 = vmatpush1.msra.mxu0 %v1083
        %1128 = vmatprep.subr.mxu0 0.0
        %1129 = vmatpush1.msra.mxu0 %v1084
        %1130 = vmatprep.subr.mxu0 0.0
        %1131 = vmatpush1.msra.mxu0 %v1085
        %1132 = vmatprep.subr.mxu0 0.0
        %1133 = vmatpush1.msra.mxu0 %v1086
        %1134 = vmatprep.subr.mxu0 0.0
        %1135 = vmatpush1.msra.mxu0 %v1087
        %1136 = vmatprep.subr.mxu0 0.0
        %1137 = vmatpush1.msra.mxu0 %v1088
        %1138 = vmatprep.subr.mxu0 0.0
        %1139 = vmatpush1.msra.mxu0 %v1089
        %1140 = vmatprep.subr.mxu0 0.0
        %1141 = vmatpush1.msra.mxu0 %v1090
        %1142 = vmatprep.subr.mxu0 0.0
        %1143 = vmatpush1.msra.mxu0 %v1091
        %1144 = vmatprep.subr.mxu0 0.0
        %1145 = vmatpush1.msra.mxu0 %v1092
        %1146 = vmatprep.subr.mxu0 0.0
        %1147 = vmatpush1.msra.mxu0 %v1093
        %1148 = vmatprep.subr.mxu0 0.0
        %1149 = vmatpush1.msra.mxu0 %v1094
        %1150 = vmatprep.subr.mxu0 0.0
        %1151 = vmatpush1.msra.mxu0 %v1095
        %1152 = vmatprep.subr.mxu0 0.0
        %1153 = vmatpush1.msra.mxu0 %v1096
        %1154 = vmatprep.subr.mxu0 0.0
        %1155 = vmatpush1.msra.mxu0 %v1097
        %1156 = vmatprep.subr.mxu0 0.0
        %1157 = vmatpush1.msra.mxu0 %v1098
        %1158 = vmatprep.subr.mxu0 0.0
        %1159 = vmatpush1.msra.mxu0 %v1099
        %1160 = vmatprep.subr.mxu0 0.0
        %1161 = vmatpush1.msra.mxu0 %v1100
        %1162 = vmatprep.subr.mxu0 0.0
        %1163 = vmatpush1.msra.mxu0 %v1101
        %1164 = vmatprep.subr.mxu0 0.0
        %1165 = vmatpush1.msra.mxu0 %v1102
        %1166 = vmatprep.subr.mxu0 0.0
        %1167 = vmatpush1.msra.mxu0 %v1103
        %1168 = vmatprep.subr.mxu0 0.0
        %1169 = vmatpush1.msra.mxu0 %v1118
        %1170 = vmatprep.subr.mxu0 0.0
        %1171 = vmatpush1.msra.mxu0 0.0
        %1172 = vmatprep.subr.mxu0 0.0
        %1173 = vmatpush1.msra.mxu0 0.0
        %1174 = vmatprep.subr.mxu0 0.0
        %1175 = vmatpush1.msra.mxu0 0.0
        %1176 = vmatprep.subr.mxu0 0.0
        %1177 = vmatpush1.msra.mxu0 0.0
        %1178 = vmatprep.subr.mxu0 0.0
        %1179 = vmatpush1.msra.mxu0 0.0
        %1180 = vmatprep.subr.mxu0 0.0
        %1181 = vmatpush1.msra.mxu0 0.0
        %1182 = vmatprep.subr.mxu0 0.0
        %1183 = vmatpush1.msra.mxu0 0.0
        %1184 = vmatprep.mubr.f32.mxu0 %v1115
        %1185 = vmatmul.mubr.f32.gmra.mrb[0].mxu0 %v1109
        %v1186 = vpop.f32.mrb[0].mxu0
        %v1187 = vadd.f32 0.0, %v1186
        %v1188 = vpop.f32.mrb[0].mxu0
        %1189 = vdwg.mxu0
        %v1190 = vadd.f32 %v1077, %v1187
        %s1191 = scalar_lea.vmem [#allocation2], 7
        %v1192 = vld [vmem:[%s1191] ss:$8 sm:$0x3]
        %v1193 = vld [vmem:[%s3 + $0x55c] sm:$0xff]
        %v1194 = vld [vmem:[%s3 + $0x564] sm:$0xff]
        %v1195 = vld [vmem:[%s3 + $0x56c] sm:$0xff]
        %v1196 = vld [vmem:[%s3 + $0x574] sm:$0xff]
        %v1197 = vld [vmem:[%s3 + $0x57c] sm:$0xff]
        %v1198 = vld [vmem:[%s3 + $0x584] sm:$0xff]
        %v1199 = vld [vmem:[%s3 + $0x58c] sm:$0xff]
        %v1200 = vld [vmem:[%s3 + $0x594] sm:$0xff]
        %v1201 = vld [vmem:[%s3 + $0x59c] sm:$0xff]
        %v1202 = vld [vmem:[%s3 + $0x5a4] sm:$0xff]
        %v1203 = vld [vmem:[%s3 + $0x5ac] sm:$0xff]
        %v1204 = vld [vmem:[%s3 + $0x5b4] sm:$0xff]
        %v1205 = vld [vmem:[%s3 + $0x5bc] sm:$0xff]
        %v1206 = vld [vmem:[%s3 + $0x5c4] sm:$0xff]
        %v1207 = vld [vmem:[%s3 + $0x5cc] sm:$0xff]
        %v1208 = vld [vmem:[%s3 + $0x5d4] sm:$0xff]
        %v1209 = vld [vmem:[%s3 + $0x5dc] sm:$0xff]
        %v1210 = vld [vmem:[%s3 + $0x5e4] sm:$0xff]
        %v1211 = vld [vmem:[%s3 + $0x5ec] sm:$0xff]
        %v1212 = vld [vmem:[%s3 + $0x5f4] sm:$0xff]
        %v1213 = vld [vmem:[%s3 + $0x5fc] sm:$0xff]
        %v1214 = vld [vmem:[%s3 + $0x604] sm:$0xff]
        %v1215 = vld [vmem:[%s3 + $0x60c] sm:$0xff]
        %v1216 = vld [vmem:[%s3 + $0x614] sm:$0xff]
        %v1217 = vld [vmem:[%s3 + $0x61c] sm:$0xf]
        %v1219 = vlaneseq
        %v1220 = vshrl.u32 %v1219, 7
        %v1221 = vsub.s32 0, %v1220
        %v1222 = vrot.slane %v1192, %v1221
        %v1223 = vlaneseq
        %v1224 = vshrl.u32 %v1223, 7
        %v1225 = vsub.s32 1, %v1224
        %v1226 = vrot.slane %v1192, %v1225
        %v1228 = vsel %vm396, %v1226, 0
        %v1231 = vsel %vm307, %v1217, 0
        %1233 = vmatprep.subr.mxu0 0.0
        %1234 = vmatpush1.msra.mxu0 %v1193
        %1235 = vmatprep.subr.mxu0 0.0
        %1236 = vmatpush1.msra.mxu0 %v1194
        %1237 = vmatprep.subr.mxu0 0.0
        %1238 = vmatpush1.msra.mxu0 %v1195
        %1239 = vmatprep.subr.mxu0 0.0
        %1240 = vmatpush1.msra.mxu0 %v1196
        %1241 = vmatprep.subr.mxu0 0.0
        %1242 = vmatpush1.msra.mxu0 %v1197
        %1243 = vmatprep.subr.mxu0 0.0
        %1244 = vmatpush1.msra.mxu0 %v1198
        %1245 = vmatprep.subr.mxu0 0.0
        %1246 = vmatpush1.msra.mxu0 %v1199
        %1247 = vmatprep.subr.mxu0 0.0
        %1248 = vmatpush1.msra.mxu0 %v1200
        %1249 = vmatprep.subr.mxu0 0.0
        %1250 = vmatpush1.msra.mxu0 %v1201
        %1251 = vmatprep.subr.mxu0 0.0
        %1252 = vmatpush1.msra.mxu0 %v1202
        %1253 = vmatprep.subr.mxu0 0.0
        %1254 = vmatpush1.msra.mxu0 %v1203
        %1255 = vmatprep.subr.mxu0 0.0
        %1256 = vmatpush1.msra.mxu0 %v1204
        %1257 = vmatprep.subr.mxu0 0.0
        %1258 = vmatpush1.msra.mxu0 %v1205
        %1259 = vmatprep.subr.mxu0 0.0
        %1260 = vmatpush1.msra.mxu0 %v1206
        %1261 = vmatprep.subr.mxu0 0.0
        %1262 = vmatpush1.msra.mxu0 %v1207
        %1263 = vmatprep.subr.mxu0 0.0
        %1264 = vmatpush1.msra.mxu0 %v1208
        %1265 = vmatprep.subr.mxu0 0.0
        %1266 = vmatpush1.msra.mxu0 %v1209
        %1267 = vmatprep.subr.mxu0 0.0
        %1268 = vmatpush1.msra.mxu0 %v1210
        %1269 = vmatprep.subr.mxu0 0.0
        %1270 = vmatpush1.msra.mxu0 %v1211
        %1271 = vmatprep.subr.mxu0 0.0
        %1272 = vmatpush1.msra.mxu0 %v1212
        %1273 = vmatprep.subr.mxu0 0.0
        %1274 = vmatpush1.msra.mxu0 %v1213
        %1275 = vmatprep.subr.mxu0 0.0
        %1276 = vmatpush1.msra.mxu0 %v1214
        %1277 = vmatprep.subr.mxu0 0.0
        %1278 = vmatpush1.msra.mxu0 %v1215
        %1279 = vmatprep.subr.mxu0 0.0
        %1280 = vmatpush1.msra.mxu0 %v1216
        %1281 = vmatprep.subr.mxu0 0.0
        %1282 = vmatpush1.msra.mxu0 %v1231
        %1283 = vmatprep.subr.mxu0 0.0
        %1284 = vmatpush1.msra.mxu0 0.0
        %1285 = vmatprep.subr.mxu0 0.0
        %1286 = vmatpush1.msra.mxu0 0.0
        %1287 = vmatprep.subr.mxu0 0.0
        %1288 = vmatpush1.msra.mxu0 0.0
        %1289 = vmatprep.subr.mxu0 0.0
        %1290 = vmatpush1.msra.mxu0 0.0
        %1291 = vmatprep.subr.mxu0 0.0
        %1292 = vmatpush1.msra.mxu0 0.0
        %1293 = vmatprep.subr.mxu0 0.0
        %1294 = vmatpush1.msra.mxu0 0.0
        %1295 = vmatprep.subr.mxu0 0.0
        %1296 = vmatpush1.msra.mxu0 0.0
        %1297 = vmatprep.mubr.f32.mxu0 %v1228
        %1298 = vmatmul.mubr.f32.gmra.mrb[0].mxu0 %v1222
        %v1299 = vpop.f32.mrb[0].mxu0
        %v1300 = vadd.f32 0.0, %v1299
        %v1301 = vpop.f32.mrb[0].mxu0
        %1302 = vdwg.mxu0
        %v1303 = vadd.f32 %v1190, %v1300
        %s1304 = scalar_lea.vmem [#allocation2], 16
        %v1305 = vld [vmem:[%s1304] ss:$8 sm:$0x3]
        %v1306 = vld [vmem:[%s3 + $0x620] sm:$0xff]
        %v1307 = vld [vmem:[%s3 + $0x628] sm:$0xff]
        %v1308 = vld [vmem:[%s3 + $0x630] sm:$0xff]
        %v1309 = vld [vmem:[%s3 + $0x638] sm:$0xff]
        %v1310 = vld [vmem:[%s3 + $0x640] sm:$0xff]
        %v1311 = vld [vmem:[%s3 + $0x648] sm:$0xff]
        %v1312 = vld [vmem:[%s3 + $0x650] sm:$0xff]
        %v1313 = vld [vmem:[%s3 + $0x658] sm:$0xff]
        %v1314 = vld [vmem:[%s3 + $0x660] sm:$0xff]
        %v1315 = vld [vmem:[%s3 + $0x668] sm:$0xff]
        %v1316 = vld [vmem:[%s3 + $0x670] sm:$0xff]
        %v1317 = vld [vmem:[%s3 + $0x678] sm:$0xff]
        %v1318 = vld [vmem:[%s3 + $0x680] sm:$0xff]
        %v1319 = vld [vmem:[%s3 + $0x688] sm:$0xff]
        %v1320 = vld [vmem:[%s3 + $0x690] sm:$0xff]
        %v1321 = vld [vmem:[%s3 + $0x698] sm:$0xff]
        %v1322 = vld [vmem:[%s3 + $0x6a0] sm:$0xff]
        %v1323 = vld [vmem:[%s3 + $0x6a8] sm:$0xff]
        %v1324 = vld [vmem:[%s3 + $0x6b0] sm:$0xff]
        %v1325 = vld [vmem:[%s3 + $0x6b8] sm:$0xff]
        %v1326 = vld [vmem:[%s3 + $0x6c0] sm:$0xff]
        %v1327 = vld [vmem:[%s3 + $0x6c8] sm:$0xff]
        %v1328 = vld [vmem:[%s3 + $0x6d0] sm:$0xff]
        %v1329 = vld [vmem:[%s3 + $0x6d8] sm:$0xff]
        %v1330 = vld [vmem:[%s3 + $0x6e0] sm:$0xf]
        %v1332 = vlaneseq
        %v1333 = vshrl.u32 %v1332, 7
        %v1334 = vsub.s32 0, %v1333
        %v1335 = vrot.slane %v1305, %v1334
        %v1336 = vlaneseq
        %v1337 = vshrl.u32 %v1336, 7
        %v1338 = vsub.s32 1, %v1337
        %v1339 = vrot.slane %v1305, %v1338
        %v1341 = vsel %vm396, %v1339, 0
        %v1344 = vsel %vm307, %v1330, 0
        %1346 = vmatprep.subr.mxu0 0.0
        %1347 = vmatpush1.msra.mxu0 %v1306
        %1348 = vmatprep.subr.mxu0 0.0
        %1349 = vmatpush1.msra.mxu0 %v1307
        %1350 = vmatprep.subr.mxu0 0.0
        %1351 = vmatpush1.msra.mxu0 %v1308
        %1352 = vmatprep.subr.mxu0 0.0
        %1353 = vmatpush1.msra.mxu0 %v1309
        %1354 = vmatprep.subr.mxu0 0.0
        %1355 = vmatpush1.msra.mxu0 %v1310
        %1356 = vmatprep.subr.mxu0 0.0
        %1357 = vmatpush1.msra.mxu0 %v1311
        %1358 = vmatprep.subr.mxu0 0.0
        %1359 = vmatpush1.msra.mxu0 %v1312
        %1360 = vmatprep.subr.mxu0 0.0
        %1361 = vmatpush1.msra.mxu0 %v1313
        %1362 = vmatprep.subr.mxu0 0.0
        %1363 = vmatpush1.msra.mxu0 %v1314
        %1364 = vmatprep.subr.mxu0 0.0
        %1365 = vmatpush1.msra.mxu0 %v1315
        %1366 = vmatprep.subr.mxu0 0.0
        %1367 = vmatpush1.msra.mxu0 %v1316
        %1368 = vmatprep.subr.mxu0 0.0
        %1369 = vmatpush1.msra.mxu0 %v1317
        %1370 = vmatprep.subr.mxu0 0.0
        %1371 = vmatpush1.msra.mxu0 %v1318
        %1372 = vmatprep.subr.mxu0 0.0
        %1373 = vmatpush1.msra.mxu0 %v1319
        %1374 = vmatprep.subr.mxu0 0.0
        %1375 = vmatpush1.msra.mxu0 %v1320
        %1376 = vmatprep.subr.mxu0 0.0
        %1377 = vmatpush1.msra.mxu0 %v1321
        %1378 = vmatprep.subr.mxu0 0.0
        %1379 = vmatpush1.msra.mxu0 %v1322
        %1380 = vmatprep.subr.mxu0 0.0
        %1381 = vmatpush1.msra.mxu0 %v1323
        %1382 = vmatprep.subr.mxu0 0.0
        %1383 = vmatpush1.msra.mxu0 %v1324
        %1384 = vmatprep.subr.mxu0 0.0
        %1385 = vmatpush1.msra.mxu0 %v1325
        %1386 = vmatprep.subr.mxu0 0.0
        %1387 = vmatpush1.msra.mxu0 %v1326
        %1388 = vmatprep.subr.mxu0 0.0
        %1389 = vmatpush1.msra.mxu0 %v1327
        %1390 = vmatprep.subr.mxu0 0.0
        %1391 = vmatpush1.msra.mxu0 %v1328
        %1392 = vmatprep.subr.mxu0 0.0
        %1393 = vmatpush1.msra.mxu0 %v1329
        %1394 = vmatprep.subr.mxu0 0.0
        %1395 = vmatpush1.msra.mxu0 %v1344
        %1396 = vmatprep.subr.mxu0 0.0
        %1397 = vmatpush1.msra.mxu0 0.0
        %1398 = vmatprep.subr.mxu0 0.0
        %1399 = vmatpush1.msra.mxu0 0.0
        %1400 = vmatprep.subr.mxu0 0.0
        %1401 = vmatpush1.msra.mxu0 0.0
        %1402 = vmatprep.subr.mxu0 0.0
        %1403 = vmatpush1.msra.mxu0 0.0
        %1404 = vmatprep.subr.mxu0 0.0
        %1405 = vmatpush1.msra.mxu0 0.0
        %1406 = vmatprep.subr.mxu0 0.0
        %1407 = vmatpush1.msra.mxu0 0.0
        %1408 = vmatprep.subr.mxu0 0.0
        %1409 = vmatpush1.msra.mxu0 0.0
        %1410 = vmatprep.mubr.f32.mxu0 %v1341
        %1411 = vmatmul.mubr.f32.gmra.mrb[0].mxu0 %v1335
        %v1412 = vpop.f32.mrb[0].mxu0
        %v1413 = vadd.f32 0.0, %v1412
        %v1414 = vpop.f32.mrb[0].mxu0
        %1415 = vdwg.mxu0
        %v1416 = vadd.f32 %v1303, %v1413
        %s1417 = scalar_lea.vmem [#allocation2], 17
        %v1418 = vld [vmem:[%s1417] ss:$8 sm:$0x3]
        %v1419 = vld [vmem:[%s3 + $0x6e4] sm:$0xff]
        %v1420 = vld [vmem:[%s3 + $0x6ec] sm:$0xff]
        %v1421 = vld [vmem:[%s3 + $0x6f4] sm:$0xff]
        %v1422 = vld [vmem:[%s3 + $0x6fc] sm:$0xff]
        %v1423 = vld [vmem:[%s3 + $0x704] sm:$0xff]
        %v1424 = vld [vmem:[%s3 + $0x70c] sm:$0xff]
        %v1425 = vld [vmem:[%s3 + $0x714] sm:$0xff]
        %v1426 = vld [vmem:[%s3 + $0x71c] sm:$0xff]
        %v1427 = vld [vmem:[%s3 + $0x724] sm:$0xff]
        %v1428 = vld [vmem:[%s3 + $0x72c] sm:$0xff]
        %v1429 = vld [vmem:[%s3 + $0x734] sm:$0xff]
        %v1430 = vld [vmem:[%s3 + $0x73c] sm:$0xff]
        %v1431 = vld [vmem:[%s3 + $0x744] sm:$0xff]
        %v1432 = vld [vmem:[%s3 + $0x74c] sm:$0xff]
        %v1433 = vld [vmem:[%s3 + $0x754] sm:$0xff]
        %v1434 = vld [vmem:[%s3 + $0x75c] sm:$0xff]
        %v1435 = vld [vmem:[%s3 + $0x764] sm:$0xff]
        %v1436 = vld [vmem:[%s3 + $0x76c] sm:$0xff]
        %v1437 = vld [vmem:[%s3 + $0x774] sm:$0xff]
        %v1438 = vld [vmem:[%s3 + $0x77c] sm:$0xff]
        %v1439 = vld [vmem:[%s3 + $0x784] sm:$0xff]
        %v1440 = vld [vmem:[%s3 + $0x78c] sm:$0xff]
        %v1441 = vld [vmem:[%s3 + $0x794] sm:$0xff]
        %v1442 = vld [vmem:[%s3 + $0x79c] sm:$0xff]
        %v1443 = vld [vmem:[%s3 + $0x7a4] sm:$0xf]
        %v1445 = vlaneseq
        %v1446 = vshrl.u32 %v1445, 7
        %v1447 = vsub.s32 0, %v1446
        %v1448 = vrot.slane %v1418, %v1447
        %v1449 = vlaneseq
        %v1450 = vshrl.u32 %v1449, 7
        %v1451 = vsub.s32 1, %v1450
        %v1452 = vrot.slane %v1418, %v1451
        %v1454 = vsel %vm396, %v1452, 0
        %v1457 = vsel %vm307, %v1443, 0
        %1459 = vmatprep.subr.mxu0 0.0
        %1460 = vmatpush1.msra.mxu0 %v1419
        %1461 = vmatprep.subr.mxu0 0.0
        %1462 = vmatpush1.msra.mxu0 %v1420
        %1463 = vmatprep.subr.mxu0 0.0
        %1464 = vmatpush1.msra.mxu0 %v1421
        %1465 = vmatprep.subr.mxu0 0.0
        %1466 = vmatpush1.msra.mxu0 %v1422
        %1467 = vmatprep.subr.mxu0 0.0
        %1468 = vmatpush1.msra.mxu0 %v1423
        %1469 = vmatprep.subr.mxu0 0.0
        %1470 = vmatpush1.msra.mxu0 %v1424
        %1471 = vmatprep.subr.mxu0 0.0
        %1472 = vmatpush1.msra.mxu0 %v1425
        %1473 = vmatprep.subr.mxu0 0.0
        %1474 = vmatpush1.msra.mxu0 %v1426
        %1475 = vmatprep.subr.mxu0 0.0
        %1476 = vmatpush1.msra.mxu0 %v1427
        %1477 = vmatprep.subr.mxu0 0.0
        %1478 = vmatpush1.msra.mxu0 %v1428
        %1479 = vmatprep.subr.mxu0 0.0
        %1480 = vmatpush1.msra.mxu0 %v1429
        %1481 = vmatprep.subr.mxu0 0.0
        %1482 = vmatpush1.msra.mxu0 %v1430
        %1483 = vmatprep.subr.mxu0 0.0
        %1484 = vmatpush1.msra.mxu0 %v1431
        %1485 = vmatprep.subr.mxu0 0.0
        %1486 = vmatpush1.msra.mxu0 %v1432
        %1487 = vmatprep.subr.mxu0 0.0
        %1488 = vmatpush1.msra.mxu0 %v1433
        %1489 = vmatprep.subr.mxu0 0.0
        %1490 = vmatpush1.msra.mxu0 %v1434
        %1491 = vmatprep.subr.mxu0 0.0
        %1492 = vmatpush1.msra.mxu0 %v1435
        %1493 = vmatprep.subr.mxu0 0.0
        %1494 = vmatpush1.msra.mxu0 %v1436
        %1495 = vmatprep.subr.mxu0 0.0
        %1496 = vmatpush1.msra.mxu0 %v1437
        %1497 = vmatprep.subr.mxu0 0.0
        %1498 = vmatpush1.msra.mxu0 %v1438
        %1499 = vmatprep.subr.mxu0 0.0
        %1500 = vmatpush1.msra.mxu0 %v1439
        %1501 = vmatprep.subr.mxu0 0.0
        %1502 = vmatpush1.msra.mxu0 %v1440
        %1503 = vmatprep.subr.mxu0 0.0
        %1504 = vmatpush1.msra.mxu0 %v1441
        %1505 = vmatprep.subr.mxu0 0.0
        %1506 = vmatpush1.msra.mxu0 %v1442
        %1507 = vmatprep.subr.mxu0 0.0
        %1508 = vmatpush1.msra.mxu0 %v1457
        %1509 = vmatprep.subr.mxu0 0.0
        %1510 = vmatpush1.msra.mxu0 0.0
        %1511 = vmatprep.subr.mxu0 0.0
        %1512 = vmatpush1.msra.mxu0 0.0
        %1513 = vmatprep.subr.mxu0 0.0
        %1514 = vmatpush1.msra.mxu0 0.0
        %1515 = vmatprep.subr.mxu0 0.0
        %1516 = vmatpush1.msra.mxu0 0.0
        %1517 = vmatprep.subr.mxu0 0.0
        %1518 = vmatpush1.msra.mxu0 0.0
        %1519 = vmatprep.subr.mxu0 0.0
        %1520 = vmatpush1.msra.mxu0 0.0
        %1521 = vmatprep.subr.mxu0 0.0
        %1522 = vmatpush1.msra.mxu0 0.0
        %1523 = vmatprep.mubr.f32.mxu0 %v1454
        %1524 = vmatmul.mubr.f32.gmra.mrb[0].mxu0 %v1448
        %v1525 = vpop.f32.mrb[0].mxu0
        %v1526 = vadd.f32 0.0, %v1525
        %v1527 = vpop.f32.mrb[0].mxu0
        %1528 = vdwg.mxu0
        %v1529 = vadd.f32 %v1416, %v1526
        %s1530 = scalar_lea.vmem [#allocation2], 18
        %v1531 = vld [vmem:[%s1530] ss:$8 sm:$0x3]
        %v1532 = vld [vmem:[%s3 + $0x7a8] sm:$0xff]
        %v1533 = vld [vmem:[%s3 + $0x7b0] sm:$0xff]
        %v1534 = vld [vmem:[%s3 + $0x7b8] sm:$0xff]
        %v1535 = vld [vmem:[%s3 + $0x7c0] sm:$0xff]
        %v1536 = vld [vmem:[%s3 + $0x7c8] sm:$0xff]
        %v1537 = vld [vmem:[%s3 + $0x7d0] sm:$0xff]
        %v1538 = vld [vmem:[%s3 + $0x7d8] sm:$0xff]
        %v1539 = vld [vmem:[%s3 + $0x7e0] sm:$0xff]
        %v1540 = vld [vmem:[%s3 + $0x7e8] sm:$0xff]
        %v1541 = vld [vmem:[%s3 + $0x7f0] sm:$0xff]
        %v1542 = vld [vmem:[%s3 + $0x7f8] sm:$0xff]
        %v1543 = vld [vmem:[%s3 + $0x800] sm:$0xff]
        %v1544 = vld [vmem:[%s3 + $0x808] sm:$0xff]
        %v1545 = vld [vmem:[%s3 + $0x810] sm:$0xff]
        %v1546 = vld [vmem:[%s3 + $0x818] sm:$0xff]
        %v1547 = vld [vmem:[%s3 + $0x820] sm:$0xff]
        %v1548 = vld [vmem:[%s3 + $0x828] sm:$0xff]
        %v1549 = vld [vmem:[%s3 + $0x830] sm:$0xff]
        %v1550 = vld [vmem:[%s3 + $0x838] sm:$0xff]
        %v1551 = vld [vmem:[%s3 + $0x840] sm:$0xff]
        %v1552 = vld [vmem:[%s3 + $0x848] sm:$0xff]
        %v1553 = vld [vmem:[%s3 + $0x850] sm:$0xff]
        %v1554 = vld [vmem:[%s3 + $0x858] sm:$0xff]
        %v1555 = vld [vmem:[%s3 + $0x860] sm:$0xff]
        %v1556 = vld [vmem:[%s3 + $0x868] sm:$0xf]
        %v1558 = vlaneseq
        %v1559 = vshrl.u32 %v1558, 7
        %v1560 = vsub.s32 0, %v1559
        %v1561 = vrot.slane %v1531, %v1560
        %v1562 = vlaneseq
        %v1563 = vshrl.u32 %v1562, 7
        %v1564 = vsub.s32 1, %v1563
        %v1565 = vrot.slane %v1531, %v1564
        %v1567 = vsel %vm396, %v1565, 0
        %v1570 = vsel %vm307, %v1556, 0
        %1572 = vmatprep.subr.mxu0 0.0
        %1573 = vmatpush1.msra.mxu0 %v1532
        %1574 = vmatprep.subr.mxu0 0.0
        %1575 = vmatpush1.msra.mxu0 %v1533
        %1576 = vmatprep.subr.mxu0 0.0
        %1577 = vmatpush1.msra.mxu0 %v1534
        %1578 = vmatprep.subr.mxu0 0.0
        %1579 = vmatpush1.msra.mxu0 %v1535
        %1580 = vmatprep.subr.mxu0 0.0
        %1581 = vmatpush1.msra.mxu0 %v1536
        %1582 = vmatprep.subr.mxu0 0.0
        %1583 = vmatpush1.msra.mxu0 %v1537
        %1584 = vmatprep.subr.mxu0 0.0
        %1585 = vmatpush1.msra.mxu0 %v1538
        %1586 = vmatprep.subr.mxu0 0.0
        %1587 = vmatpush1.msra.mxu0 %v1539
        %1588 = vmatprep.subr.mxu0 0.0
        %1589 = vmatpush1.msra.mxu0 %v1540
        %1590 = vmatprep.subr.mxu0 0.0
        %1591 = vmatpush1.msra.mxu0 %v1541
        %1592 = vmatprep.subr.mxu0 0.0
        %1593 = vmatpush1.msra.mxu0 %v1542
        %1594 = vmatprep.subr.mxu0 0.0
        %1595 = vmatpush1.msra.mxu0 %v1543
        %1596 = vmatprep.subr.mxu0 0.0
        %1597 = vmatpush1.msra.mxu0 %v1544
        %1598 = vmatprep.subr.mxu0 0.0
        %1599 = vmatpush1.msra.mxu0 %v1545
        %1600 = vmatprep.subr.mxu0 0.0
        %1601 = vmatpush1.msra.mxu0 %v1546
        %1602 = vmatprep.subr.mxu0 0.0
        %1603 = vmatpush1.msra.mxu0 %v1547
        %1604 = vmatprep.subr.mxu0 0.0
        %1605 = vmatpush1.msra.mxu0 %v1548
        %1606 = vmatprep.subr.mxu0 0.0
        %1607 = vmatpush1.msra.mxu0 %v1549
        %1608 = vmatprep.subr.mxu0 0.0
        %1609 = vmatpush1.msra.mxu0 %v1550
        %1610 = vmatprep.subr.mxu0 0.0
        %1611 = vmatpush1.msra.mxu0 %v1551
        %1612 = vmatprep.subr.mxu0 0.0
        %1613 = vmatpush1.msra.mxu0 %v1552
        %1614 = vmatprep.subr.mxu0 0.0
        %1615 = vmatpush1.msra.mxu0 %v1553
        %1616 = vmatprep.subr.mxu0 0.0
        %1617 = vmatpush1.msra.mxu0 %v1554
        %1618 = vmatprep.subr.mxu0 0.0
        %1619 = vmatpush1.msra.mxu0 %v1555
        %1620 = vmatprep.subr.mxu0 0.0
        %1621 = vmatpush1.msra.mxu0 %v1570
        %1622 = vmatprep.subr.mxu0 0.0
        %1623 = vmatpush1.msra.mxu0 0.0
        %1624 = vmatprep.subr.mxu0 0.0
        %1625 = vmatpush1.msra.mxu0 0.0
        %1626 = vmatprep.subr.mxu0 0.0
        %1627 = vmatpush1.msra.mxu0 0.0
        %1628 = vmatprep.subr.mxu0 0.0
        %1629 = vmatpush1.msra.mxu0 0.0
        %1630 = vmatprep.subr.mxu0 0.0
        %1631 = vmatpush1.msra.mxu0 0.0
        %1632 = vmatprep.subr.mxu0 0.0
        %1633 = vmatpush1.msra.mxu0 0.0
        %1634 = vmatprep.subr.mxu0 0.0
        %1635 = vmatpush1.msra.mxu0 0.0
        %1636 = vmatprep.mubr.f32.mxu0 %v1567
        %1637 = vmatmul.mubr.f32.gmra.mrb[0].mxu0 %v1561
        %v1638 = vpop.f32.mrb[0].mxu0
        %v1639 = vadd.f32 0.0, %v1638
        %v1640 = vpop.f32.mrb[0].mxu0
        %1641 = vdwg.mxu0
        %v1642 = vadd.f32 %v1529, %v1639
        %s1643 = scalar_lea.vmem [#allocation2], 19
        %v1644 = vld [vmem:[%s1643] ss:$8 sm:$0x3]
        %v1645 = vld [vmem:[%s3 + $0x86c] sm:$0xff]
        %v1646 = vld [vmem:[%s3 + $0x874] sm:$0xff]
        %v1647 = vld [vmem:[%s3 + $0x87c] sm:$0xff]
        %v1648 = vld [vmem:[%s3 + $0x884] sm:$0xff]
        %v1649 = vld [vmem:[%s3 + $0x88c] sm:$0xff]
        %v1650 = vld [vmem:[%s3 + $0x894] sm:$0xff]
        %v1651 = vld [vmem:[%s3 + $0x89c] sm:$0xff]
        %v1652 = vld [vmem:[%s3 + $0x8a4] sm:$0xff]
        %v1653 = vld [vmem:[%s3 + $0x8ac] sm:$0xff]
        %v1654 = vld [vmem:[%s3 + $0x8b4] sm:$0xff]
        %v1655 = vld [vmem:[%s3 + $0x8bc] sm:$0xff]
        %v1656 = vld [vmem:[%s3 + $0x8c4] sm:$0xff]
        %v1657 = vld [vmem:[%s3 + $0x8cc] sm:$0xff]
        %v1658 = vld [vmem:[%s3 + $0x8d4] sm:$0xff]
        %v1659 = vld [vmem:[%s3 + $0x8dc] sm:$0xff]
        %v1660 = vld [vmem:[%s3 + $0x8e4] sm:$0xff]
        %v1661 = vld [vmem:[%s3 + $0x8ec] sm:$0xff]
        %v1662 = vld [vmem:[%s3 + $0x8f4] sm:$0xff]
        %v1663 = vld [vmem:[%s3 + $0x8fc] sm:$0xff]
        %v1664 = vld [vmem:[%s3 + $0x904] sm:$0xff]
        %v1665 = vld [vmem:[%s3 + $0x90c] sm:$0xff]
        %v1666 = vld [vmem:[%s3 + $0x914] sm:$0xff]
        %v1667 = vld [vmem:[%s3 + $0x91c] sm:$0xff]
        %v1668 = vld [vmem:[%s3 + $0x924] sm:$0xff]
        %v1669 = vld [vmem:[%s3 + $0x92c] sm:$0xf]
        %v1671 = vlaneseq
        %v1672 = vshrl.u32 %v1671, 7
        %v1673 = vsub.s32 0, %v1672
        %v1674 = vrot.slane %v1644, %v1673
        %v1675 = vlaneseq
        %v1676 = vshrl.u32 %v1675, 7
        %v1677 = vsub.s32 1, %v1676
        %v1678 = vrot.slane %v1644, %v1677
        %v1680 = vsel %vm396, %v1678, 0
        %v1683 = vsel %vm307, %v1669, 0
        %1685 = vmatprep.subr.mxu0 0.0
        %1686 = vmatpush1.msra.mxu0 %v1645
        %1687 = vmatprep.subr.mxu0 0.0
        %1688 = vmatpush1.msra.mxu0 %v1646
        %1689 = vmatprep.subr.mxu0 0.0
        %1690 = vmatpush1.msra.mxu0 %v1647
        %1691 = vmatprep.subr.mxu0 0.0
        %1692 = vmatpush1.msra.mxu0 %v1648
        %1693 = vmatprep.subr.mxu0 0.0
        %1694 = vmatpush1.msra.mxu0 %v1649
        %1695 = vmatprep.subr.mxu0 0.0
        %1696 = vmatpush1.msra.mxu0 %v1650
        %1697 = vmatprep.subr.mxu0 0.0
        %1698 = vmatpush1.msra.mxu0 %v1651
        %1699 = vmatprep.subr.mxu0 0.0
        %1700 = vmatpush1.msra.mxu0 %v1652
        %1701 = vmatprep.subr.mxu0 0.0
        %1702 = vmatpush1.msra.mxu0 %v1653
        %1703 = vmatprep.subr.mxu0 0.0
        %1704 = vmatpush1.msra.mxu0 %v1654
        %1705 = vmatprep.subr.mxu0 0.0
        %1706 = vmatpush1.msra.mxu0 %v1655
        %1707 = vmatprep.subr.mxu0 0.0
        %1708 = vmatpush1.msra.mxu0 %v1656
        %1709 = vmatprep.subr.mxu0 0.0
        %1710 = vmatpush1.msra.mxu0 %v1657
        %1711 = vmatprep.subr.mxu0 0.0
        %1712 = vmatpush1.msra.mxu0 %v1658
        %1713 = vmatprep.subr.mxu0 0.0
        %1714 = vmatpush1.msra.mxu0 %v1659
        %1715 = vmatprep.subr.mxu0 0.0
        %1716 = vmatpush1.msra.mxu0 %v1660
        %1717 = vmatprep.subr.mxu0 0.0
        %1718 = vmatpush1.msra.mxu0 %v1661
        %1719 = vmatprep.subr.mxu0 0.0
        %1720 = vmatpush1.msra.mxu0 %v1662
        %1721 = vmatprep.subr.mxu0 0.0
        %1722 = vmatpush1.msra.mxu0 %v1663
        %1723 = vmatprep.subr.mxu0 0.0
        %1724 = vmatpush1.msra.mxu0 %v1664
        %1725 = vmatprep.subr.mxu0 0.0
        %1726 = vmatpush1.msra.mxu0 %v1665
        %1727 = vmatprep.subr.mxu0 0.0
        %1728 = vmatpush1.msra.mxu0 %v1666
        %1729 = vmatprep.subr.mxu0 0.0
        %1730 = vmatpush1.msra.mxu0 %v1667
        %1731 = vmatprep.subr.mxu0 0.0
        %1732 = vmatpush1.msra.mxu0 %v1668
        %1733 = vmatprep.subr.mxu0 0.0
        %1734 = vmatpush1.msra.mxu0 %v1683
        %1735 = vmatprep.subr.mxu0 0.0
        %1736 = vmatpush1.msra.mxu0 0.0
        %1737 = vmatprep.subr.mxu0 0.0
        %1738 = vmatpush1.msra.mxu0 0.0
        %1739 = vmatprep.subr.mxu0 0.0
        %1740 = vmatpush1.msra.mxu0 0.0
        %1741 = vmatprep.subr.mxu0 0.0
        %1742 = vmatpush1.msra.mxu0 0.0
        %1743 = vmatprep.subr.mxu0 0.0
        %1744 = vmatpush1.msra.mxu0 0.0
        %1745 = vmatprep.subr.mxu0 0.0
        %1746 = vmatpush1.msra.mxu0 0.0
        %1747 = vmatprep.subr.mxu0 0.0
        %1748 = vmatpush1.msra.mxu0 0.0
        %1749 = vmatprep.mubr.f32.mxu0 %v1680
        %1750 = vmatmul.mubr.f32.gmra.mrb[0].mxu0 %v1674
        %v1751 = vpop.f32.mrb[0].mxu0
        %v1752 = vadd.f32 0.0, %v1751
        %v1753 = vpop.f32.mrb[0].mxu0
        %1754 = vdwg.mxu0
        %v1755 = vadd.f32 %v1642, %v1752
        %s1756 = scalar_lea.vmem [#allocation2], 20
        %v1757 = vld [vmem:[%s1756] ss:$8 sm:$0x3]
        %v1758 = vld [vmem:[%s3 + $0x930] sm:$0xff]
        %v1759 = vld [vmem:[%s3 + $0x938] sm:$0xff]
        %v1760 = vld [vmem:[%s3 + $0x940] sm:$0xff]
        %v1761 = vld [vmem:[%s3 + $0x948] sm:$0xff]
        %v1762 = vld [vmem:[%s3 + $0x950] sm:$0xff]
        %v1763 = vld [vmem:[%s3 + $0x958] sm:$0xff]
        %v1764 = vld [vmem:[%s3 + $0x960] sm:$0xff]
        %v1765 = vld [vmem:[%s3 + $0x968] sm:$0xff]
        %v1766 = vld [vmem:[%s3 + $0x970] sm:$0xff]
        %v1767 = vld [vmem:[%s3 + $0x978] sm:$0xff]
        %v1768 = vld [vmem:[%s3 + $0x980] sm:$0xff]
        %v1769 = vld [vmem:[%s3 + $0x988] sm:$0xff]
        %v1770 = vld [vmem:[%s3 + $0x990] sm:$0xff]
        %v1771 = vld [vmem:[%s3 + $0x998] sm:$0xff]
        %v1772 = vld [vmem:[%s3 + $0x9a0] sm:$0xff]
        %v1773 = vld [vmem:[%s3 + $0x9a8] sm:$0xff]
        %v1774 = vld [vmem:[%s3 + $0x9b0] sm:$0xff]
        %v1775 = vld [vmem:[%s3 + $0x9b8] sm:$0xff]
        %v1776 = vld [vmem:[%s3 + $0x9c0] sm:$0xff]
        %v1777 = vld [vmem:[%s3 + $0x9c8] sm:$0xff]
        %v1778 = vld [vmem:[%s3 + $0x9d0] sm:$0xff]
        %v1779 = vld [vmem:[%s3 + $0x9d8] sm:$0xff]
        %v1780 = vld [vmem:[%s3 + $0x9e0] sm:$0xff]
        %v1781 = vld [vmem:[%s3 + $0x9e8] sm:$0xff]
        %v1782 = vld [vmem:[%s3 + $0x9f0] sm:$0xf]
        %v1784 = vlaneseq
        %v1785 = vshrl.u32 %v1784, 7
        %v1786 = vsub.s32 0, %v1785
        %v1787 = vrot.slane %v1757, %v1786
        %v1788 = vlaneseq
        %v1789 = vshrl.u32 %v1788, 7
        %v1790 = vsub.s32 1, %v1789
        %v1791 = vrot.slane %v1757, %v1790
        %v1793 = vsel %vm396, %v1791, 0
        %v1796 = vsel %vm307, %v1782, 0
        %1798 = vmatprep.subr.mxu0 0.0
        %1799 = vmatpush1.msra.mxu0 %v1758
        %1800 = vmatprep.subr.mxu0 0.0
        %1801 = vmatpush1.msra.mxu0 %v1759
        %1802 = vmatprep.subr.mxu0 0.0
        %1803 = vmatpush1.msra.mxu0 %v1760
        %1804 = vmatprep.subr.mxu0 0.0
        %1805 = vmatpush1.msra.mxu0 %v1761
        %1806 = vmatprep.subr.mxu0 0.0
        %1807 = vmatpush1.msra.mxu0 %v1762
        %1808 = vmatprep.subr.mxu0 0.0
        %1809 = vmatpush1.msra.mxu0 %v1763
        %1810 = vmatprep.subr.mxu0 0.0
        %1811 = vmatpush1.msra.mxu0 %v1764
        %1812 = vmatprep.subr.mxu0 0.0
        %1813 = vmatpush1.msra.mxu0 %v1765
        %1814 = vmatprep.subr.mxu0 0.0
        %1815 = vmatpush1.msra.mxu0 %v1766
        %1816 = vmatprep.subr.mxu0 0.0
        %1817 = vmatpush1.msra.mxu0 %v1767
        %1818 = vmatprep.subr.mxu0 0.0
        %1819 = vmatpush1.msra.mxu0 %v1768
        %1820 = vmatprep.subr.mxu0 0.0
        %1821 = vmatpush1.msra.mxu0 %v1769
        %1822 = vmatprep.subr.mxu0 0.0
        %1823 = vmatpush1.msra.mxu0 %v1770
        %1824 = vmatprep.subr.mxu0 0.0
        %1825 = vmatpush1.msra.mxu0 %v1771
        %1826 = vmatprep.subr.mxu0 0.0
        %1827 = vmatpush1.msra.mxu0 %v1772
        %1828 = vmatprep.subr.mxu0 0.0
        %1829 = vmatpush1.msra.mxu0 %v1773
        %1830 = vmatprep.subr.mxu0 0.0
        %1831 = vmatpush1.msra.mxu0 %v1774
        %1832 = vmatprep.subr.mxu0 0.0
        %1833 = vmatpush1.msra.mxu0 %v1775
        %1834 = vmatprep.subr.mxu0 0.0
        %1835 = vmatpush1.msra.mxu0 %v1776
        %1836 = vmatprep.subr.mxu0 0.0
        %1837 = vmatpush1.msra.mxu0 %v1777
        %1838 = vmatprep.subr.mxu0 0.0
        %1839 = vmatpush1.msra.mxu0 %v1778
        %1840 = vmatprep.subr.mxu0 0.0
        %1841 = vmatpush1.msra.mxu0 %v1779
        %1842 = vmatprep.subr.mxu0 0.0
        %1843 = vmatpush1.msra.mxu0 %v1780
        %1844 = vmatprep.subr.mxu0 0.0
        %1845 = vmatpush1.msra.mxu0 %v1781
        %1846 = vmatprep.subr.mxu0 0.0
        %1847 = vmatpush1.msra.mxu0 %v1796
        %1848 = vmatprep.subr.mxu0 0.0
        %1849 = vmatpush1.msra.mxu0 0.0
        %1850 = vmatprep.subr.mxu0 0.0
        %1851 = vmatpush1.msra.mxu0 0.0
        %1852 = vmatprep.subr.mxu0 0.0
        %1853 = vmatpush1.msra.mxu0 0.0
        %1854 = vmatprep.subr.mxu0 0.0
        %1855 = vmatpush1.msra.mxu0 0.0
        %1856 = vmatprep.subr.mxu0 0.0
        %1857 = vmatpush1.msra.mxu0 0.0
        %1858 = vmatprep.subr.mxu0 0.0
        %1859 = vmatpush1.msra.mxu0 0.0
        %1860 = vmatprep.subr.mxu0 0.0
        %1861 = vmatpush1.msra.mxu0 0.0
        %1862 = vmatprep.mubr.f32.mxu0 %v1793
        %1863 = vmatmul.mubr.f32.gmra.mrb[0].mxu0 %v1787
        %v1864 = vpop.f32.mrb[0].mxu0
        %v1865 = vadd.f32 0.0, %v1864
        %v1866 = vpop.f32.mrb[0].mxu0
        %1867 = vdwg.mxu0
        %v1868 = vadd.f32 %v1755, %v1865
        %s1869 = scalar_lea.vmem [#allocation2], 21
        %v1870 = vld [vmem:[%s1869] ss:$8 sm:$0x3]
        %v1871 = vld [vmem:[%s3 + $0x9f4] sm:$0xff]
        %v1872 = vld [vmem:[%s3 + $0x9fc] sm:$0xff]
        %v1873 = vld [vmem:[%s3 + $0xa04] sm:$0xff]
        %v1874 = vld [vmem:[%s3 + $0xa0c] sm:$0xff]
        %v1875 = vld [vmem:[%s3 + $0xa14] sm:$0xff]
        %v1876 = vld [vmem:[%s3 + $0xa1c] sm:$0xff]
        %v1877 = vld [vmem:[%s3 + $0xa24] sm:$0xff]
        %v1878 = vld [vmem:[%s3 + $0xa2c] sm:$0xff]
        %v1879 = vld [vmem:[%s3 + $0xa34] sm:$0xff]
        %v1880 = vld [vmem:[%s3 + $0xa3c] sm:$0xff]
        %v1881 = vld [vmem:[%s3 + $0xa44] sm:$0xff]
        %v1882 = vld [vmem:[%s3 + $0xa4c] sm:$0xff]
        %v1883 = vld [vmem:[%s3 + $0xa54] sm:$0xff]
        %v1884 = vld [vmem:[%s3 + $0xa5c] sm:$0xff]
        %v1885 = vld [vmem:[%s3 + $0xa64] sm:$0xff]
        %v1886 = vld [vmem:[%s3 + $0xa6c] sm:$0xff]
        %v1887 = vld [vmem:[%s3 + $0xa74] sm:$0xff]
        %v1888 = vld [vmem:[%s3 + $0xa7c] sm:$0xff]
        %v1889 = vld [vmem:[%s3 + $0xa84] sm:$0xff]
        %v1890 = vld [vmem:[%s3 + $0xa8c] sm:$0xff]
        %v1891 = vld [vmem:[%s3 + $0xa94] sm:$0xff]
        %v1892 = vld [vmem:[%s3 + $0xa9c] sm:$0xff]
        %v1893 = vld [vmem:[%s3 + $0xaa4] sm:$0xff]
        %v1894 = vld [vmem:[%s3 + $0xaac] sm:$0xff]
        %v1895 = vld [vmem:[%s3 + $0xab4] sm:$0xf]
        %v1897 = vlaneseq
        %v1898 = vshrl.u32 %v1897, 7
        %v1899 = vsub.s32 0, %v1898
        %v1900 = vrot.slane %v1870, %v1899
        %v1901 = vlaneseq
        %v1902 = vshrl.u32 %v1901, 7
        %v1903 = vsub.s32 1, %v1902
        %v1904 = vrot.slane %v1870, %v1903
        %v1906 = vsel %vm396, %v1904, 0
        %v1909 = vsel %vm307, %v1895, 0
        %1911 = vmatprep.subr.mxu0 0.0
        %1912 = vmatpush1.msra.mxu0 %v1871
        %1913 = vmatprep.subr.mxu0 0.0
        %1914 = vmatpush1.msra.mxu0 %v1872
        %1915 = vmatprep.subr.mxu0 0.0
        %1916 = vmatpush1.msra.mxu0 %v1873
        %1917 = vmatprep.subr.mxu0 0.0
        %1918 = vmatpush1.msra.mxu0 %v1874
        %1919 = vmatprep.subr.mxu0 0.0
        %1920 = vmatpush1.msra.mxu0 %v1875
        %1921 = vmatprep.subr.mxu0 0.0
        %1922 = vmatpush1.msra.mxu0 %v1876
        %1923 = vmatprep.subr.mxu0 0.0
        %1924 = vmatpush1.msra.mxu0 %v1877
        %1925 = vmatprep.subr.mxu0 0.0
        %1926 = vmatpush1.msra.mxu0 %v1878
        %1927 = vmatprep.subr.mxu0 0.0
        %1928 = vmatpush1.msra.mxu0 %v1879
        %1929 = vmatprep.subr.mxu0 0.0
        %1930 = vmatpush1.msra.mxu0 %v1880
        %1931 = vmatprep.subr.mxu0 0.0
        %1932 = vmatpush1.msra.mxu0 %v1881
        %1933 = vmatprep.subr.mxu0 0.0
        %1934 = vmatpush1.msra.mxu0 %v1882
        %1935 = vmatprep.subr.mxu0 0.0
        %1936 = vmatpush1.msra.mxu0 %v1883
        %1937 = vmatprep.subr.mxu0 0.0
        %1938 = vmatpush1.msra.mxu0 %v1884
        %1939 = vmatprep.subr.mxu0 0.0
        %1940 = vmatpush1.msra.mxu0 %v1885
        %1941 = vmatprep.subr.mxu0 0.0
        %1942 = vmatpush1.msra.mxu0 %v1886
        %1943 = vmatprep.subr.mxu0 0.0
        %1944 = vmatpush1.msra.mxu0 %v1887
        %1945 = vmatprep.subr.mxu0 0.0
        %1946 = vmatpush1.msra.mxu0 %v1888
        %1947 = vmatprep.subr.mxu0 0.0
        %1948 = vmatpush1.msra.mxu0 %v1889
        %1949 = vmatprep.subr.mxu0 0.0
        %1950 = vmatpush1.msra.mxu0 %v1890
        %1951 = vmatprep.subr.mxu0 0.0
        %1952 = vmatpush1.msra.mxu0 %v1891
        %1953 = vmatprep.subr.mxu0 0.0
        %1954 = vmatpush1.msra.mxu0 %v1892
        %1955 = vmatprep.subr.mxu0 0.0
        %1956 = vmatpush1.msra.mxu0 %v1893
        %1957 = vmatprep.subr.mxu0 0.0
        %1958 = vmatpush1.msra.mxu0 %v1894
        %1959 = vmatprep.subr.mxu0 0.0
        %1960 = vmatpush1.msra.mxu0 %v1909
        %1961 = vmatprep.subr.mxu0 0.0
        %1962 = vmatpush1.msra.mxu0 0.0
        %1963 = vmatprep.subr.mxu0 0.0
        %1964 = vmatpush1.msra.mxu0 0.0
        %1965 = vmatprep.subr.mxu0 0.0
        %1966 = vmatpush1.msra.mxu0 0.0
        %1967 = vmatprep.subr.mxu0 0.0
        %1968 = vmatpush1.msra.mxu0 0.0
        %1969 = vmatprep.subr.mxu0 0.0
        %1970 = vmatpush1.msra.mxu0 0.0
        %1971 = vmatprep.subr.mxu0 0.0
        %1972 = vmatpush1.msra.mxu0 0.0
        %1973 = vmatprep.subr.mxu0 0.0
        %1974 = vmatpush1.msra.mxu0 0.0
        %1975 = vmatprep.mubr.f32.mxu0 %v1906
        %1976 = vmatmul.mubr.f32.gmra.mrb[0].mxu0 %v1900
        %v1977 = vpop.f32.mrb[0].mxu0
        %v1978 = vadd.f32 0.0, %v1977
        %v1979 = vpop.f32.mrb[0].mxu0
        %1980 = vdwg.mxu0
        %v1981 = vadd.f32 %v1868, %v1978
        %s1982 = scalar_lea.vmem [#allocation2], 22
        %v1983 = vld [vmem:[%s1982] ss:$8 sm:$0x3]
        %v1984 = vld [vmem:[%s3 + $0xab8] sm:$0xff]
        %v1985 = vld [vmem:[%s3 + $0xac0] sm:$0xff]
        %v1986 = vld [vmem:[%s3 + $0xac8] sm:$0xff]
        %v1987 = vld [vmem:[%s3 + $0xad0] sm:$0xff]
        %v1988 = vld [vmem:[%s3 + $0xad8] sm:$0xff]
        %v1989 = vld [vmem:[%s3 + $0xae0] sm:$0xff]
        %v1990 = vld [vmem:[%s3 + $0xae8] sm:$0xff]
        %v1991 = vld [vmem:[%s3 + $0xaf0] sm:$0xff]
        %v1992 = vld [vmem:[%s3 + $0xaf8] sm:$0xff]
        %v1993 = vld [vmem:[%s3 + $0xb00] sm:$0xff]
        %v1994 = vld [vmem:[%s3 + $0xb08] sm:$0xff]
        %v1995 = vld [vmem:[%s3 + $0xb10] sm:$0xff]
        %v1996 = vld [vmem:[%s3 + $0xb18] sm:$0xff]
        %v1997 = vld [vmem:[%s3 + $0xb20] sm:$0xff]
        %v1998 = vld [vmem:[%s3 + $0xb28] sm:$0xff]
        %v1999 = vld [vmem:[%s3 + $0xb30] sm:$0xff]
        %v2000 = vld [vmem:[%s3 + $0xb38] sm:$0xff]
        %v2001 = vld [vmem:[%s3 + $0xb40] sm:$0xff]
        %v2002 = vld [vmem:[%s3 + $0xb48] sm:$0xff]
        %v2003 = vld [vmem:[%s3 + $0xb50] sm:$0xff]
        %v2004 = vld [vmem:[%s3 + $0xb58] sm:$0xff]
        %v2005 = vld [vmem:[%s3 + $0xb60] sm:$0xff]
        %v2006 = vld [vmem:[%s3 + $0xb68] sm:$0xff]
        %v2007 = vld [vmem:[%s3 + $0xb70] sm:$0xff]
        %v2008 = vld [vmem:[%s3 + $0xb78] sm:$0xf]
        %v2010 = vlaneseq
        %v2011 = vshrl.u32 %v2010, 7
        %v2012 = vsub.s32 0, %v2011
        %v2013 = vrot.slane %v1983, %v2012
        %v2014 = vlaneseq
        %v2015 = vshrl.u32 %v2014, 7
        %v2016 = vsub.s32 1, %v2015
        %v2017 = vrot.slane %v1983, %v2016
        %v2019 = vsel %vm396, %v2017, 0
        %v2022 = vsel %vm307, %v2008, 0
        %2024 = vmatprep.subr.mxu0 0.0
        %2025 = vmatpush1.msra.mxu0 %v1984
        %2026 = vmatprep.subr.mxu0 0.0
        %2027 = vmatpush1.msra.mxu0 %v1985
        %2028 = vmatprep.subr.mxu0 0.0
        %2029 = vmatpush1.msra.mxu0 %v1986
        %2030 = vmatprep.subr.mxu0 0.0
        %2031 = vmatpush1.msra.mxu0 %v1987
        %2032 = vmatprep.subr.mxu0 0.0
        %2033 = vmatpush1.msra.mxu0 %v1988
        %2034 = vmatprep.subr.mxu0 0.0
        %2035 = vmatpush1.msra.mxu0 %v1989
        %2036 = vmatprep.subr.mxu0 0.0
        %2037 = vmatpush1.msra.mxu0 %v1990
        %2038 = vmatprep.subr.mxu0 0.0
        %2039 = vmatpush1.msra.mxu0 %v1991
        %2040 = vmatprep.subr.mxu0 0.0
        %2041 = vmatpush1.msra.mxu0 %v1992
        %2042 = vmatprep.subr.mxu0 0.0
        %2043 = vmatpush1.msra.mxu0 %v1993
        %2044 = vmatprep.subr.mxu0 0.0
        %2045 = vmatpush1.msra.mxu0 %v1994
        %2046 = vmatprep.subr.mxu0 0.0
        %2047 = vmatpush1.msra.mxu0 %v1995
        %2048 = vmatprep.subr.mxu0 0.0
        %2049 = vmatpush1.msra.mxu0 %v1996
        %2050 = vmatprep.subr.mxu0 0.0
        %2051 = vmatpush1.msra.mxu0 %v1997
        %2052 = vmatprep.subr.mxu0 0.0
        %2053 = vmatpush1.msra.mxu0 %v1998
        %2054 = vmatprep.subr.mxu0 0.0
        %2055 = vmatpush1.msra.mxu0 %v1999
        %2056 = vmatprep.subr.mxu0 0.0
        %2057 = vmatpush1.msra.mxu0 %v2000
        %2058 = vmatprep.subr.mxu0 0.0
        %2059 = vmatpush1.msra.mxu0 %v2001
        %2060 = vmatprep.subr.mxu0 0.0
        %2061 = vmatpush1.msra.mxu0 %v2002
        %2062 = vmatprep.subr.mxu0 0.0
        %2063 = vmatpush1.msra.mxu0 %v2003
        %2064 = vmatprep.subr.mxu0 0.0
        %2065 = vmatpush1.msra.mxu0 %v2004
        %2066 = vmatprep.subr.mxu0 0.0
        %2067 = vmatpush1.msra.mxu0 %v2005
        %2068 = vmatprep.subr.mxu0 0.0
        %2069 = vmatpush1.msra.mxu0 %v2006
        %2070 = vmatprep.subr.mxu0 0.0
        %2071 = vmatpush1.msra.mxu0 %v2007
        %2072 = vmatprep.subr.mxu0 0.0
        %2073 = vmatpush1.msra.mxu0 %v2022
        %2074 = vmatprep.subr.mxu0 0.0
        %2075 = vmatpush1.msra.mxu0 0.0
        %2076 = vmatprep.subr.mxu0 0.0
        %2077 = vmatpush1.msra.mxu0 0.0
        %2078 = vmatprep.subr.mxu0 0.0
        %2079 = vmatpush1.msra.mxu0 0.0
        %2080 = vmatprep.subr.mxu0 0.0
        %2081 = vmatpush1.msra.mxu0 0.0
        %2082 = vmatprep.subr.mxu0 0.0
        %2083 = vmatpush1.msra.mxu0 0.0
        %2084 = vmatprep.subr.mxu0 0.0
        %2085 = vmatpush1.msra.mxu0 0.0
        %2086 = vmatprep.subr.mxu0 0.0
        %2087 = vmatpush1.msra.mxu0 0.0
        %2088 = vmatprep.mubr.f32.mxu0 %v2019
        %2089 = vmatmul.mubr.f32.gmra.mrb[0].mxu0 %v2013
        %v2090 = vpop.f32.mrb[0].mxu0
        %v2091 = vadd.f32 0.0, %v2090
        %v2092 = vpop.f32.mrb[0].mxu0
        %2093 = vdwg.mxu0
        %v2094 = vadd.f32 %v1981, %v2091
        %s2095 = scalar_lea.vmem [#allocation2], 23
        %v2096 = vld [vmem:[%s2095] ss:$8 sm:$0x3]
        %v2097 = vld [vmem:[%s3 + $0xb7c] sm:$0xff]
        %v2098 = vld [vmem:[%s3 + $0xb84] sm:$0xff]
        %v2099 = vld [vmem:[%s3 + $0xb8c] sm:$0xff]
        %v2100 = vld [vmem:[%s3 + $0xb94] sm:$0xff]
        %v2101 = vld [vmem:[%s3 + $0xb9c] sm:$0xff]
        %v2102 = vld [vmem:[%s3 + $0xba4] sm:$0xff]
        %v2103 = vld [vmem:[%s3 + $0xbac] sm:$0xff]
        %v2104 = vld [vmem:[%s3 + $0xbb4] sm:$0xff]
        %v2105 = vld [vmem:[%s3 + $0xbbc] sm:$0xff]
        %v2106 = vld [vmem:[%s3 + $0xbc4] sm:$0xff]
        %v2107 = vld [vmem:[%s3 + $0xbcc] sm:$0xff]
        %v2108 = vld [vmem:[%s3 + $0xbd4] sm:$0xff]
        %v2109 = vld [vmem:[%s3 + $0xbdc] sm:$0xff]
        %v2110 = vld [vmem:[%s3 + $0xbe4] sm:$0xff]
        %v2111 = vld [vmem:[%s3 + $0xbec] sm:$0xff]
        %v2112 = vld [vmem:[%s3 + $0xbf4] sm:$0xff]
        %v2113 = vld [vmem:[%s3 + $0xbfc] sm:$0xff]
        %v2114 = vld [vmem:[%s3 + $0xc04] sm:$0xff]
        %v2115 = vld [vmem:[%s3 + $0xc0c] sm:$0xff]
        %v2116 = vld [vmem:[%s3 + $0xc14] sm:$0xff]
        %v2117 = vld [vmem:[%s3 + $0xc1c] sm:$0xff]
        %v2118 = vld [vmem:[%s3 + $0xc24] sm:$0xff]
        %v2119 = vld [vmem:[%s3 + $0xc2c] sm:$0xff]
        %v2120 = vld [vmem:[%s3 + $0xc34] sm:$0xff]
        %v2121 = vld [vmem:[%s3 + $0xc3c] sm:$0xf]
        %v2123 = vlaneseq
        %v2124 = vshrl.u32 %v2123, 7
        %v2125 = vsub.s32 0, %v2124
        %v2126 = vrot.slane %v2096, %v2125
        %v2127 = vlaneseq
        %v2128 = vshrl.u32 %v2127, 7
        %v2129 = vsub.s32 1, %v2128
        %v2130 = vrot.slane %v2096, %v2129
        %v2132 = vsel %vm396, %v2130, 0
        %v2135 = vsel %vm307, %v2121, 0
        %2137 = vmatprep.subr.mxu0 0.0
        %2138 = vmatpush1.msra.mxu0 %v2097
        %2139 = vmatprep.subr.mxu0 0.0
        %2140 = vmatpush1.msra.mxu0 %v2098
        %2141 = vmatprep.subr.mxu0 0.0
        %2142 = vmatpush1.msra.mxu0 %v2099
        %2143 = vmatprep.subr.mxu0 0.0
        %2144 = vmatpush1.msra.mxu0 %v2100
        %2145 = vmatprep.subr.mxu0 0.0
        %2146 = vmatpush1.msra.mxu0 %v2101
        %2147 = vmatprep.subr.mxu0 0.0
        %2148 = vmatpush1.msra.mxu0 %v2102
        %2149 = vmatprep.subr.mxu0 0.0
        %2150 = vmatpush1.msra.mxu0 %v2103
        %2151 = vmatprep.subr.mxu0 0.0
        %2152 = vmatpush1.msra.mxu0 %v2104
        %2153 = vmatprep.subr.mxu0 0.0
        %2154 = vmatpush1.msra.mxu0 %v2105
        %2155 = vmatprep.subr.mxu0 0.0
        %2156 = vmatpush1.msra.mxu0 %v2106
        %2157 = vmatprep.subr.mxu0 0.0
        %2158 = vmatpush1.msra.mxu0 %v2107
        %2159 = vmatprep.subr.mxu0 0.0
        %2160 = vmatpush1.msra.mxu0 %v2108
        %2161 = vmatprep.subr.mxu0 0.0
        %2162 = vmatpush1.msra.mxu0 %v2109
        %2163 = vmatprep.subr.mxu0 0.0
        %2164 = vmatpush1.msra.mxu0 %v2110
        %2165 = vmatprep.subr.mxu0 0.0
        %2166 = vmatpush1.msra.mxu0 %v2111
        %2167 = vmatprep.subr.mxu0 0.0
        %2168 = vmatpush1.msra.mxu0 %v2112
        %2169 = vmatprep.subr.mxu0 0.0
        %2170 = vmatpush1.msra.mxu0 %v2113
        %2171 = vmatprep.subr.mxu0 0.0
        %2172 = vmatpush1.msra.mxu0 %v2114
        %2173 = vmatprep.subr.mxu0 0.0
        %2174 = vmatpush1.msra.mxu0 %v2115
        %2175 = vmatprep.subr.mxu0 0.0
        %2176 = vmatpush1.msra.mxu0 %v2116
        %2177 = vmatprep.subr.mxu0 0.0
        %2178 = vmatpush1.msra.mxu0 %v2117
        %2179 = vmatprep.subr.mxu0 0.0
        %2180 = vmatpush1.msra.mxu0 %v2118
        %2181 = vmatprep.subr.mxu0 0.0
        %2182 = vmatpush1.msra.mxu0 %v2119
        %2183 = vmatprep.subr.mxu0 0.0
        %2184 = vmatpush1.msra.mxu0 %v2120
        %2185 = vmatprep.subr.mxu0 0.0
        %2186 = vmatpush1.msra.mxu0 %v2135
        %2187 = vmatprep.subr.mxu0 0.0
        %2188 = vmatpush1.msra.mxu0 0.0
        %2189 = vmatprep.subr.mxu0 0.0
        %2190 = vmatpush1.msra.mxu0 0.0
        %2191 = vmatprep.subr.mxu0 0.0
        %2192 = vmatpush1.msra.mxu0 0.0
        %2193 = vmatprep.subr.mxu0 0.0
        %2194 = vmatpush1.msra.mxu0 0.0
        %2195 = vmatprep.subr.mxu0 0.0
        %2196 = vmatpush1.msra.mxu0 0.0
        %2197 = vmatprep.subr.mxu0 0.0
        %2198 = vmatpush1.msra.mxu0 0.0
        %2199 = vmatprep.subr.mxu0 0.0
        %2200 = vmatpush1.msra.mxu0 0.0
        %2201 = vmatprep.mubr.f32.mxu0 %v2132
        %2202 = vmatmul.mubr.f32.gmra.mrb[0].mxu0 %v2126
        %v2203 = vpop.f32.mrb[0].mxu0
        %v2204 = vadd.f32 0.0, %v2203
        %v2205 = vpop.f32.mrb[0].mxu0
        %2206 = vdwg.mxu0
        %v2207 = vadd.f32 %v2094, %v2204
        %v2208 = vmax.f32 %v2207, 0.0
        %v2209 = vld [vmem:[%s5] sm:$0xff]
        %v2210 = vld [vmem:[%s5 + $0x8] sm:$0xff]
        %v2211 = vld [vmem:[%s5 + $0x10] sm:$0xff]
        %v2212 = vld [vmem:[%s5 + $0x18] sm:$0xff]
        %v2213 = vld [vmem:[%s6] sm:$0x1]
        %vm2214 = vcmask 261120
        %v2216 = vsel %vm2214, %v2208, 0
        %2218 = vmatprep.subr.mxu0 0.0
        %2219 = vmatpush1.msra.mxu0 %v2209
        %2220 = vmatprep.subr.mxu0 0.0
        %2221 = vmatpush1.msra.mxu0 %v2210
        %2222 = vmatprep.subr.mxu0 0.0
        %2223 = vmatpush1.msra.mxu0 %v2211
        %2224 = vmatprep.subr.mxu0 0.0
        %2225 = vmatpush1.msra.mxu0 %v2212
        %2226 = vmatprep.subr.mxu0 0.0
        %2227 = vmatpush1.msra.mxu0 0.0
        %2228 = vmatprep.subr.mxu0 0.0
        %2229 = vmatpush1.msra.mxu0 0.0
        %2230 = vmatprep.subr.mxu0 0.0
        %2231 = vmatpush1.msra.mxu0 0.0
        %2232 = vmatprep.subr.mxu0 0.0
        %2233 = vmatpush1.msra.mxu0 0.0
        %2234 = vmatprep.subr.mxu0 0.0
        %2235 = vmatpush1.msra.mxu0 0.0
        %2236 = vmatprep.subr.mxu0 0.0
        %2237 = vmatpush1.msra.mxu0 0.0
        %2238 = vmatprep.subr.mxu0 0.0
        %2239 = vmatpush1.msra.mxu0 0.0
        %2240 = vmatprep.subr.mxu0 0.0
        %2241 = vmatpush1.msra.mxu0 0.0
        %2242 = vmatprep.subr.mxu0 0.0
        %2243 = vmatpush1.msra.mxu0 0.0
        %2244 = vmatprep.subr.mxu0 0.0
        %2245 = vmatpush1.msra.mxu0 0.0
        %2246 = vmatprep.subr.mxu0 0.0
        %2247 = vmatpush1.msra.mxu0 0.0
        %2248 = vmatprep.subr.mxu0 0.0
        %2249 = vmatpush1.msra.mxu0 0.0
        %2250 = vmatprep.subr.mxu0 0.0
        %2251 = vmatpush1.msra.mxu0 0.0
        %2252 = vmatprep.subr.mxu0 0.0
        %2253 = vmatpush1.msra.mxu0 0.0
        %2254 = vmatprep.subr.mxu0 0.0
        %2255 = vmatpush1.msra.mxu0 0.0
        %2256 = vmatprep.subr.mxu0 0.0
        %2257 = vmatpush1.msra.mxu0 0.0
        %2258 = vmatprep.subr.mxu0 0.0
        %2259 = vmatpush1.msra.mxu0 0.0
        %2260 = vmatprep.subr.mxu0 0.0
        %2261 = vmatpush1.msra.mxu0 0.0
        %2262 = vmatprep.subr.mxu0 0.0
        %2263 = vmatpush1.msra.mxu0 0.0
        %2264 = vmatprep.subr.mxu0 0.0
        %2265 = vmatpush1.msra.mxu0 0.0
        %2266 = vmatprep.subr.mxu0 0.0
        %2267 = vmatpush1.msra.mxu0 0.0
        %2268 = vmatprep.subr.mxu0 0.0
        %2269 = vmatpush1.msra.mxu0 0.0
        %2270 = vmatprep.subr.mxu0 0.0
        %2271 = vmatpush1.msra.mxu0 0.0
        %2272 = vmatprep.subr.mxu0 0.0
        %2273 = vmatpush1.msra.mxu0 0.0
        %2274 = vmatprep.subr.mxu0 0.0
        %2275 = vmatpush1.msra.mxu0 0.0
        %2276 = vmatprep.subr.mxu0 0.0
        %2277 = vmatpush1.msra.mxu0 0.0
        %2278 = vmatprep.subr.mxu0 0.0
        %2279 = vmatpush1.msra.mxu0 0.0
        %2280 = vmatprep.subr.mxu0 0.0
        %2281 = vmatpush1.msra.mxu0 0.0
        %2282 = vmatprep.mubr.f32.mxu0 0.0
        %2283 = vmatmul.mubr.f32.gmra.mrb[0].mxu0 %v2216
        %v2284 = vpop.f32.mrb[0].mxu0
        %v2285 = vadd.f32 %v2213, %v2284
        %v2286 = vpop.f32.mrb[0].mxu0
        %2287 = vdwg.mxu0
        %v2288 = vmax.f32 %v2285, 0.0
        %vm2289 = vcmask 253952
        %2290 = vst.msk [vmem:[%s270] sm:$0x1] %vm2289, %v2288
        %s2291 = sand.u32 %s181, 1
        %s2292 = scalar_lea.sflag [#allocation4], %s2291
        %s2293 = sand.u32 %s181, 1
        %s2294 = scalar_lea.vmem [#allocation3], %s2293
        // Predicated region
        $region49: #{cnn_base_forward.1} parent=47 // pred_check
          %p2295 = pneg %p191
        $region50: #{cnn_base_forward.1} parent=47 // pred_check_branch
          %2297 = sbr.rel (%p2295) target = $region52
        $region51: #{cnn_base_forward.1} parent=47 // pred_region
          %s2299 = ssub.s32 16, 16
          %2300 = vsyncadd %s2292, %s2299
          %s2301 = smul.addr %s21, 16
          %s2302 = scalar_lea.hbm %s7, %s2301
          %s2304 = sshll.u32 %s2294, 4
          %s2305 = int_to_ptr.vmem [resolvable:$true] %s2304
          %2307 = dma.vmem_to_hbm [thread:$0]  %s2305, 16, %s2302, %s2292
        $region52: #{cnn_base_forward.1} parent=47 // pred_fallthru
          _
      $region48: #{cnn_base_forward.1} parent=5 // pred_fallthru
        _
      %p2308 = scmp.le.s32.totalorder 2, %s16
      // Predicated region
      $region53: #{cnn_base_forward.1} parent=5 // pred_check
        %p2309 = pneg %p2308
      $region54: #{cnn_base_forward.1} parent=5 // pred_check_branch
        %2311 = sbr.rel (%p2309) target = $region56
      $region55: #{cnn_base_forward.1} parent=5 // pred_region
        %s2312 = ssub.s32 %s16, 2
        // Predicated region
        $region57: #{cnn_base_forward.1} parent=55 // pred_check
          %p2313 = pneg %p197
        $region58: #{cnn_base_forward.1} parent=55 // pred_check_branch
          %2315 = sbr.rel (%p2313) target = $region60
        $region59: #{cnn_base_forward.1} parent=55 // pred_region
          %s2316 = sand.u32 %s182, 1
          %s2317 = scalar_lea.sflag [#allocation4], %s2316
          %s2318 = sand.u32 %s182, 1
          %s2319 = scalar_lea.vmem [#allocation3], %s2318
          %2320 = dma.done %s2317, 16
        $region60: #{cnn_base_forward.1} parent=55 // pred_fallthru
          _
      $region56: #{cnn_base_forward.1} parent=5 // pred_fallthru
        _
    $region6: #{cnn_base_forward.1} parent=1 // loop_footer
      %s20 = sadd.s32 1, %s16
    $region7: #{cnn_base_forward.1} parent=1 // loop_footer_branch
      %15 = sbr.rel target = $region3
    $region8: #{cnn_base_forward.1} parent=1 // loop_exit
      _
    %2321 = vsyncpa [#allocation4], 1
    %s2322 = scalar_lea.sflag [#allocation4], 1
    %2323 = vsyncpa %s2322, 1

</llo_original>
